<compile_context>
chip_gen: v5e
topology: v5e:2x2
jax: 0.10.0
libtpu: 0.0.40
codegen_flags: <defaults>
</compile_context>

<pallas_src>
import itertools

import numpy as np
import jax
import jax.numpy as jnp
from jax.experimental import pallas as pl
from jax.experimental.pallas import tpu as pltpu

LANE = 128
SUBLANE = 8


def _elu(x):
    # ELU(alpha=1): x if x > 0 else exp(x) - 1
    return jnp.where(x > 0, x, jnp.exp(x) - 1.0)


def _round_up(n, m):
    return (n + m - 1) // m * m


# ---------------------------------------------------------------------------
# Pallas kernel: fused [spline-GCN | residual] matmul + ELUs + VPU temporal conv
# ---------------------------------------------------------------------------
def st_gcn_kernel(xg_ref, ar_ref, bar_ref, wt_ref, bt_ref, o_ref):
    """One grid step = Bn batch elements.

    xg_ref : (T_in*Bn, VCin_p)      bf16, rows packed time-major (t, b)
    ar_ref : (VCin_p, 2*VCout_p)    bf16, [GCN | residual] fused operator
    bar_ref: (1, 2*VCout_p)         f32 bias
    wt_ref : (T_out_pad, T_in)      f32, SMEM (temporal-conv weights, scalars)
    bt_ref : (T_out_pad,)           f32, SMEM (temporal-conv bias, scalars)
    o_ref  : (T_out_pad*Bn, VCout_p) f32, rows packed time-major (ot, b)
    """
    t_out_pad, t_in = wt_ref.shape
    out_rows, cpad = o_ref.shape
    bn = out_rows // t_out_pad
    assert xg_ref.shape[0] == t_in * bn
    assert ar_ref.shape[1] == 2 * cpad

    # One fused MXU matmul for the spline-GCN operator and the residual 1x1
    # conv (they share the same LHS rows): (T_in*Bn, VCin_p) x (VCin_p, 2*cpad)
    yr = jnp.dot(xg_ref[...], ar_ref[...],
                 preferred_element_type=jnp.float32) + bar_ref[...]
    yr = _elu(yr)                                    # (t_in*bn, 2*cpad)

    # Split on the 128-lane-aligned boundary, add, ELU.  Stays a 2-D f32 slab.
    z = _elu(yr[:, :cpad] + yr[:, cpad:])            # (t_in*bn, cpad)

    # Temporal 1x1 conv (in_seq -> out_seq) as unrolled VPU scalar-vector
    # FMAs; weights/bias are SMEM scalars, every slice/store is a contiguous
    # sublane-aligned (bn, cpad) slab.  No MXU, no relayouts, no repack.
    for ot in range(t_out_pad):
        acc = z[0:bn, :] * wt_ref[ot, 0] + bt_ref[ot]
        for t in range(1, t_in):
            acc = acc + z[t * bn:(t + 1) * bn, :] * wt_ref[ot, t]
        o_ref[ot * bn:(ot + 1) * bn, :] = _elu(acc)


def st_gcn_pallas(xg2d, AR, bAR, Wt, bt, *, bn):
    rows, vcin_p = xg2d.shape
    t_out_pad, t_in = Wt.shape
    n_blocks = rows // (bn * t_in)
    c2 = AR.shape[1]
    cpad = c2 // 2
    out_rows_blk = t_out_pad * bn

    flops = (2 * rows * vcin_p * c2                          # fused GCN+res
             + 2 * n_blocks * bn * t_out_pad * t_in * cpad)  # temporal conv
    transcendentals = rows * 3 * cpad + n_blocks * bn * t_out_pad * cpad
    bytes_accessed = (rows * vcin_p * 2 + int(AR.size) * 2 + int(bAR.size) * 4
                      + int(Wt.size) * 4 + int(bt.size) * 4
                      + n_blocks * out_rows_blk * cpad * 4)

    return pl.pallas_call(
        st_gcn_kernel,
        out_shape=jax.ShapeDtypeStruct((n_blocks * out_rows_blk, cpad),
                                       jnp.float32),
        grid_spec=pltpu.PrefetchScalarGridSpec(
            num_scalar_prefetch=0,
            grid=(n_blocks,),
            in_specs=[
                pl.BlockSpec((bn * t_in, vcin_p), lambda n: (n, 0)),
                # grid-invariant operators: single-buffered, fetched once
                pl.BlockSpec(AR.shape, lambda n: (0, 0),
                             pipeline_mode=pl.Buffered(1)),
                pl.BlockSpec(bAR.shape, lambda n: (0, 0),
                             pipeline_mode=pl.Buffered(1)),
                # tiny temporal-conv tables -> SMEM scalars
                pl.BlockSpec(memory_space=pltpu.MemorySpace.SMEM),
                pl.BlockSpec(memory_space=pltpu.MemorySpace.SMEM),
            ],
            out_specs=pl.BlockSpec((out_rows_blk, cpad), lambda n: (n, 0)),
        ),
        compiler_params=pltpu.CompilerParams(
            dimension_semantics=("parallel",),
            vmem_limit_bytes=32 * 1024 * 1024),
        cost_estimate=pl.CostEstimate(
            flops=int(flops),
            transcendentals=int(transcendentals),
            bytes_accessed=int(bytes_accessed)),
    )(xg2d, AR, bAR, Wt, bt)


# ---------------------------------------------------------------------------
# Host-side operator construction (glue, runs once).
# ---------------------------------------------------------------------------
def spline_edge_weights(edge_attr, w_spline, K, dim, c_in, c_out):
    """Degree-1 open B-spline basis -> per-edge (C_in, C_out) weight matrices."""
    e = edge_attr.shape[0]
    v = edge_attr * (K - 1)
    lo = np.clip(np.floor(v).astype(np.int64), 0, K - 1)
    frac = (v - np.floor(v)).astype(np.float32)
    hi = np.clip(lo + 1, 0, K - 1)
    w_e = np.zeros((e, c_in, c_out), np.float32)
    for combo in itertools.product((0, 1), repeat=dim):
        b = np.ones((e,), np.float32)
        idx = np.zeros((e,), np.int64)
        for d, c in enumerate(combo):
            b = b * (frac[:, d] if c else (1.0 - frac[:, d]))
            idx = idx * K + (hi[:, d] if c else lo[:, d])
        w_e += b[:, None, None] * w_spline[idx]
    return w_e


def build_gcn_operator(edge_index, edge_attr, w_spline, w_root, b_gcn,
                       V, K, dim, c_in, c_out):
    src, dst = edge_index[0], edge_index[1]
    w_e = spline_edge_weights(edge_attr, w_spline, K, dim, c_in, c_out)
    A = np.zeros((V * c_in, V * c_out), np.float32)
    for e in range(src.shape[0]):
        s, d = int(src[e]), int(dst[e])
        A[s * c_in:(s + 1) * c_in, d * c_out:(d + 1) * c_out] += w_e[e]
    for i in range(V):  # root weight (self contribution)
        A[i * c_in:(i + 1) * c_in, i * c_out:(i + 1) * c_out] += w_root
    bg = np.tile(b_gcn, V).astype(np.float32)                           # (V*c_out,)
    return A, bg


def pack_operators(A, bg, Rblk, brt, vcin, vcout):
    """Concat [A | Rblk] with zero padding to 128-lane-aligned widths."""
    vcin_p = _round_up(vcin, LANE)
    vcout_p = _round_up(vcout, LANE)
    AR = np.zeros((vcin_p, 2 * vcout_p), np.float32)
    AR[:vcin, :vcout] = A
    AR[:vcin, vcout_p:vcout_p + vcout] = Rblk
    bAR = np.zeros((1, 2 * vcout_p), np.float32)
    bAR[0, :vcout] = bg
    bAR[0, vcout_p:vcout_p + vcout] = brt
    return AR, bAR, vcin_p, vcout_p


if __name__ == "__main__":
    # --- small deterministic config --------------------------------------
    N, V, C_in, C_out = 64, 5, 4, 8
    T_in, T_out = 8, 6          # in_seq, out_seq
    dim, K = 3, 3               # edge-attr dim, spline kernel_size[0]
    # Bn*T_in = 256 rows per grid step (fills MXU M dim, v6e/v7x); grid = 2
    # keeps both v7x TensorCores busy.  Bn multiple of 8 -> sublane-aligned
    # per-time slabs in the kernel.
    Bn = 32
    assert Bn % SUBLANE == 0 and Bn * T_in >= 256

    VCin, VCout = V * C_in, V * C_out
    T_out_pad = _round_up(T_out, SUBLANE)

    key = jax.random.PRNGKey(0)
    ks = jax.random.split(key, 8)

    # input x in the module's layout (N, V, C, T)
    x = jax.random.normal(ks[0], (N, V, C_in, T_in), dtype=jnp.float32)

    # graph: directed ring both ways on V nodes, replicated N times to mirror
    # the PyTorch call convention (expand() only uses the first E columns).
    src = np.array([i for i in range(V)] + [(i + 1) % V for i in range(V)], np.int64)
    dst = np.array([(i + 1) % V for i in range(V)] + [i for i in range(V)], np.int64)
    E = src.shape[0]
    edge_index = np.tile(np.stack([src, dst], 0), (1, N))               # (2, N*E)
    edge_attr = np.asarray(
        jax.random.uniform(ks[1], (N * E, dim), dtype=jnp.float32))     # (N*E, dim)

    # --- deterministic parameters (shapes from __init__) -----------------
    w_spline = 0.1 * np.asarray(jax.random.normal(ks[2], (K ** dim, C_in, C_out)),
                                np.float32)
    w_root = 0.1 * np.asarray(jax.random.normal(ks[3], (C_in, C_out)), np.float32)
    b_gcn = 0.1 * np.asarray(jax.random.normal(ks[4], (C_out,)), np.float32)
    w_res = 0.1 * np.asarray(jax.random.normal(ks[5], (C_out, C_in)), np.float32)   # Conv2d 1x1
    b_res = 0.1 * np.asarray(jax.random.normal(ks[6], (C_out,)), np.float32)
    w_tcn = 0.1 * np.asarray(jax.random.normal(ks[7], (T_out, T_in)), np.float32)   # Conv2d 1x1
    b_tcn = 0.05 * np.ones((T_out,), np.float32)

    # --- host-side operator construction ----------------------------------
    ei = edge_index[:, :E]          # expand() with sample_rate=None
    ea = edge_attr[:E, :]
    A_np, bg_np = build_gcn_operator(ei, ea, w_spline, w_root, b_gcn,
                                     V, K, dim, C_in, C_out)
    Rblk_np = np.kron(np.eye(V, dtype=np.float32), w_res.T)             # (V*Cin, V*Cout)
    brt_np = np.tile(b_res, V).astype(np.float32)                       # (V*Cout,)
    AR_np, bAR_np, VCin_p, VCout_p = pack_operators(A_np, bg_np, Rblk_np, brt_np,
                                                    VCin, VCout)

    # temporal-conv tables, T_out zero-padded to 8 (dense sublane stores)
    Wt_np = np.zeros((T_out_pad, T_in), np.float32); Wt_np[:T_out] = w_tcn
    bt_np = np.zeros((T_out_pad,), np.float32); bt_np[:T_out] = b_tcn

    AR = jnp.asarray(AR_np).astype(jnp.bfloat16)                        # bf16 weights
    bAR = jnp.asarray(bAR_np)                                           # f32 bias
    Wt = jnp.asarray(Wt_np)                                             # f32 SMEM scalars
    bt = jnp.asarray(bt_np)                                             # f32 SMEM scalars

    # x (N,V,C,T) -> (N, T, V*C_in), pad batch & lanes, then pack each block
    # time-major (T_in, Bn) so in-kernel per-time slices are contiguous.
    xg = jnp.transpose(x, (0, 3, 1, 2)).reshape(N, T_in, VCin)
    N_pad = _round_up(N, Bn)
    n_blocks = N_pad // Bn
    xg_pad = jnp.pad(xg, ((0, N_pad - N), (0, 0), (0, VCin_p - VCin)))
    xg2d = (xg_pad.reshape(n_blocks, Bn, T_in, VCin_p)
            .transpose(0, 2, 1, 3)
            .reshape(n_blocks * T_in * Bn, VCin_p)
            .astype(jnp.bfloat16))

    # --- run Pallas kernel -------------------------------------------------
    out2d = st_gcn_pallas(xg2d, AR, bAR, Wt, bt, bn=Bn)   # (n_blocks*T_out_pad*Bn, VCout_p)
    out_nt = (out2d.reshape(n_blocks, T_out_pad, Bn, VCout_p)
              .transpose(0, 2, 1, 3)
              .reshape(N_pad, T_out_pad, VCout_p))[:N, :T_out, :VCout]
    # -> PyTorch result layout (N, V, C_out, out_seq)
    out = jnp.transpose(out_nt.reshape(N, T_out, V, C_out), (0, 2, 3, 1))
    out = jax.block_until_ready(out)

    # --- pure-JAX reference (same bf16 operand quantization, f32 math) -----
    hp = jax.lax.Precision.HIGHEST
    q = lambda a: jnp.asarray(a).astype(jnp.bfloat16).astype(jnp.float32)
    xg_q = q(xg)
    A_q, R_q = q(A_np), q(Rblk_np)
    y_ref = _elu(jnp.einsum('ntv,vw->ntw', xg_q, A_q, precision=hp)
                 + jnp.asarray(bg_np))
    r_ref = _elu(jnp.einsum('ntv,vw->ntw', xg_q, R_q, precision=hp)
                 + jnp.asarray(brt_np))
    z_ref = _elu(y_ref + r_ref)                                   # f32, no repack
    o_r = _elu(jnp.einsum('ot,ntw->now', jnp.asarray(w_tcn), z_ref, precision=hp)
               + jnp.asarray(b_tcn)[None, :, None])
    ref = jnp.transpose(o_r.reshape(N, T_out, V, C_out), (0, 2, 3, 1))

    assert out.shape == (N, V, C_out, T_out), out.shape
    np.testing.assert_allclose(np.asarray(out), np.asarray(ref), atol=5e-3, rtol=5e-3)
    print("KERNEL_OK")
</pallas_src>

<mosaic_0001>
module attributes {stable_mosaic.version = 11 : i64} {
  func.func @st_gcn_kernel(%arg0: i32, %arg1: memref<256x128xbf16, #tpu.memory_space<vmem>>, %arg2: memref<128x256xbf16, #tpu.memory_space<vmem>>, %arg3: memref<1x256xf32, #tpu.memory_space<vmem>>, %arg4: memref<8x8xf32, #tpu.memory_space<smem>>, %arg5: memref<8xf32, #tpu.memory_space<smem>>, %arg6: memref<256x128xf32, #tpu.memory_space<vmem>>) attributes {dimension_semantics = [#tpu.dimension_semantics<parallel>], iteration_bounds = array<i64: 2>, scalar_prefetch = 0 : i64, scratch_operands = 0 : i64, tpu.core_type = #tpu.core_type<tc>, window_params = [{transform_indices = @transform_0, window_bounds = array<i64: 256, 128>}, {pipeline_mode = #tpu.pipeline_mode<synchronous>, transform_indices = @transform_1, window_bounds = array<i64: 128, 256>}, {pipeline_mode = #tpu.pipeline_mode<synchronous>, transform_indices = @transform_2, window_bounds = array<i64: 1, 256>}, {transform_indices = @transform_3, window_bounds = array<i64: 8, 8>}, {transform_indices = @transform_4, window_bounds = array<i64: 8>}, {transform_indices = @transform_5, window_bounds = array<i64: 256, 128>}]} {
    %c0 = arith.constant 0 : index
    %c0_0 = arith.constant 0 : index
    %0 = vector.load %arg1[%c0, %c0_0] : memref<256x128xbf16, #tpu.memory_space<vmem>>, vector<256x128xbf16>
    %c0_1 = arith.constant 0 : index
    %c0_2 = arith.constant 0 : index
    %1 = vector.load %arg2[%c0_1, %c0_2] : memref<128x256xbf16, #tpu.memory_space<vmem>>, vector<128x256xbf16>
    %cst = arith.constant dense<0.000000e+00> : vector<256x256xf32>
    %2 = tpu.matmul %0, %1, %cst {dimension_numbers = #tpu.dot_dimension_numbers<[1], [0], [0], [1], [0, 0, 1, 1], [], []>} : vector<256x128xbf16>, vector<128x256xbf16>, vector<256x256xf32> -> vector<256x256xf32>
    %c0_3 = arith.constant 0 : index
    %c0_4 = arith.constant 0 : index
    %3 = vector.load %arg3[%c0_3, %c0_4] : memref<1x256xf32, #tpu.memory_space<vmem>>, vector<1x256xf32>
    %4 = vector.broadcast %3 : vector<1x256xf32> to vector<256x256xf32>
    %5 = arith.addf %2, %4 : vector<256x256xf32>
    %cst_5 = arith.constant 0.000000e+00 : f32
    %6 = vector.broadcast %cst_5 : f32 to vector<256x256xf32>
    %7 = arith.cmpf ogt, %5, %6 : vector<256x256xf32>
    %8 = math.exp %5 : vector<256x256xf32>
    %cst_6 = arith.constant 1.000000e+00 : f32
    %9 = vector.broadcast %cst_6 : f32 to vector<256x256xf32>
    %10 = arith.subf %8, %9 : vector<256x256xf32>
    %11 = arith.select %7, %5, %10 : vector<256x256xi1>, vector<256x256xf32>
    %12 = vector.extract_strided_slice %11 {offsets = [0, 0], sizes = [256, 128], strides = [1, 1]} : vector<256x256xf32> to vector<256x128xf32>
    %13 = vector.extract_strided_slice %11 {offsets = [0, 128], sizes = [256, 128], strides = [1, 1]} : vector<256x256xf32> to vector<256x128xf32>
    %14 = arith.addf %12, %13 : vector<256x128xf32>
    %cst_7 = arith.constant 0.000000e+00 : f32
    %15 = vector.broadcast %cst_7 : f32 to vector<256x128xf32>
    %16 = arith.cmpf ogt, %14, %15 : vector<256x128xf32>
    %17 = math.exp %14 : vector<256x128xf32>
    %cst_8 = arith.constant 1.000000e+00 : f32
    %18 = vector.broadcast %cst_8 : f32 to vector<256x128xf32>
    %19 = arith.subf %17, %18 : vector<256x128xf32>
    %20 = arith.select %16, %14, %19 : vector<256x128xi1>, vector<256x128xf32>
    %21 = vector.extract_strided_slice %20 {offsets = [0, 0], sizes = [32, 128], strides = [1, 1]} : vector<256x128xf32> to vector<32x128xf32>
    %c0_9 = arith.constant 0 : index
    %c0_10 = arith.constant 0 : index
    %22 = memref.load %arg4[%c0_9, %c0_10] : memref<8x8xf32, #tpu.memory_space<smem>>
    %23 = vector.broadcast %22 : f32 to vector<32x128xf32>
    %24 = arith.mulf %21, %23 : vector<32x128xf32>
    %c0_11 = arith.constant 0 : index
    %25 = memref.load %arg5[%c0_11] : memref<8xf32, #tpu.memory_space<smem>>
    %26 = vector.broadcast %25 : f32 to vector<32x128xf32>
    %27 = arith.addf %24, %26 : vector<32x128xf32>
    %28 = vector.extract_strided_slice %20 {offsets = [32, 0], sizes = [32, 128], strides = [1, 1]} : vector<256x128xf32> to vector<32x128xf32>
    %c0_12 = arith.constant 0 : index
    %c1 = arith.constant 1 : index
    %29 = memref.load %arg4[%c0_12, %c1] : memref<8x8xf32, #tpu.memory_space<smem>>
    %30 = vector.broadcast %29 : f32 to vector<32x128xf32>
    %31 = arith.mulf %28, %30 : vector<32x128xf32>
    %32 = arith.addf %27, %31 : vector<32x128xf32>
    %33 = vector.extract_strided_slice %20 {offsets = [64, 0], sizes = [32, 128], strides = [1, 1]} : vector<256x128xf32> to vector<32x128xf32>
    %c0_13 = arith.constant 0 : index
    %c2 = arith.constant 2 : index
    %34 = memref.load %arg4[%c0_13, %c2] : memref<8x8xf32, #tpu.memory_space<smem>>
    %35 = vector.broadcast %34 : f32 to vector<32x128xf32>
    %36 = arith.mulf %33, %35 : vector<32x128xf32>
    %37 = arith.addf %32, %36 : vector<32x128xf32>
    %38 = vector.extract_strided_slice %20 {offsets = [96, 0], sizes = [32, 128], strides = [1, 1]} : vector<256x128xf32> to vector<32x128xf32>
    %c0_14 = arith.constant 0 : index
    %c3 = arith.constant 3 : index
    %39 = memref.load %arg4[%c0_14, %c3] : memref<8x8xf32, #tpu.memory_space<smem>>
    %40 = vector.broadcast %39 : f32 to vector<32x128xf32>
    %41 = arith.mulf %38, %40 : vector<32x128xf32>
    %42 = arith.addf %37, %41 : vector<32x128xf32>
    %43 = vector.extract_strided_slice %20 {offsets = [128, 0], sizes = [32, 128], strides = [1, 1]} : vector<256x128xf32> to vector<32x128xf32>
    %c0_15 = arith.constant 0 : index
    %c4 = arith.constant 4 : index
    %44 = memref.load %arg4[%c0_15, %c4] : memref<8x8xf32, #tpu.memory_space<smem>>
    %45 = vector.broadcast %44 : f32 to vector<32x128xf32>
    %46 = arith.mulf %43, %45 : vector<32x128xf32>
    %47 = arith.addf %42, %46 : vector<32x128xf32>
    %48 = vector.extract_strided_slice %20 {offsets = [160, 0], sizes = [32, 128], strides = [1, 1]} : vector<256x128xf32> to vector<32x128xf32>
    %c0_16 = arith.constant 0 : index
    %c5 = arith.constant 5 : index
    %49 = memref.load %arg4[%c0_16, %c5] : memref<8x8xf32, #tpu.memory_space<smem>>
    %50 = vector.broadcast %49 : f32 to vector<32x128xf32>
    %51 = arith.mulf %48, %50 : vector<32x128xf32>
    %52 = arith.addf %47, %51 : vector<32x128xf32>
    %53 = vector.extract_strided_slice %20 {offsets = [192, 0], sizes = [32, 128], strides = [1, 1]} : vector<256x128xf32> to vector<32x128xf32>
    %c0_17 = arith.constant 0 : index
    %c6 = arith.constant 6 : index
    %54 = memref.load %arg4[%c0_17, %c6] : memref<8x8xf32, #tpu.memory_space<smem>>
    %55 = vector.broadcast %54 : f32 to vector<32x128xf32>
    %56 = arith.mulf %53, %55 : vector<32x128xf32>
    %57 = arith.addf %52, %56 : vector<32x128xf32>
    %58 = vector.extract_strided_slice %20 {offsets = [224, 0], sizes = [32, 128], strides = [1, 1]} : vector<256x128xf32> to vector<32x128xf32>
    %c0_18 = arith.constant 0 : index
    %c7 = arith.constant 7 : index
    %59 = memref.load %arg4[%c0_18, %c7] : memref<8x8xf32, #tpu.memory_space<smem>>
    %60 = vector.broadcast %59 : f32 to vector<32x128xf32>
    %61 = arith.mulf %58, %60 : vector<32x128xf32>
    %62 = arith.addf %57, %61 : vector<32x128xf32>
    %cst_19 = arith.constant 0.000000e+00 : f32
    %63 = vector.broadcast %cst_19 : f32 to vector<32x128xf32>
    %64 = arith.cmpf ogt, %62, %63 : vector<32x128xf32>
    %65 = math.exp %62 : vector<32x128xf32>
    %cst_20 = arith.constant 1.000000e+00 : f32
    %66 = vector.broadcast %cst_20 : f32 to vector<32x128xf32>
    %67 = arith.subf %65, %66 : vector<32x128xf32>
    %68 = arith.select %64, %62, %67 : vector<32x128xi1>, vector<32x128xf32>
    %c0_21 = arith.constant 0 : index
    %c0_22 = arith.constant 0 : index
    %69 = vector.load %arg6[%c0_21, %c0_22] : memref<256x128xf32, #tpu.memory_space<vmem>>, vector<32x128xf32>
    tpu.vector_store %arg6[%c0_21, %c0_22], %68 {strides = array<i32>} : memref<256x128xf32, #tpu.memory_space<vmem>>, vector<32x128xf32>,
    %70 = vector.extract_strided_slice %20 {offsets = [0, 0], sizes = [32, 128], strides = [1, 1]} : vector<256x128xf32> to vector<32x128xf32>
    %c1_23 = arith.constant 1 : index
    %c0_24 = arith.constant 0 : index
    %71 = memref.load %arg4[%c1_23, %c0_24] : memref<8x8xf32, #tpu.memory_space<smem>>
    %72 = vector.broadcast %71 : f32 to vector<32x128xf32>
    %73 = arith.mulf %70, %72 : vector<32x128xf32>
    %c1_25 = arith.constant 1 : index
    %74 = memref.load %arg5[%c1_25] : memref<8xf32, #tpu.memory_space<smem>>
    %75 = vector.broadcast %74 : f32 to vector<32x128xf32>
    %76 = arith.addf %73, %75 : vector<32x128xf32>
    %77 = vector.extract_strided_slice %20 {offsets = [32, 0], sizes = [32, 128], strides = [1, 1]} : vector<256x128xf32> to vector<32x128xf32>
    %c1_26 = arith.constant 1 : index
    %c1_27 = arith.constant 1 : index
    %78 = memref.load %arg4[%c1_26, %c1_27] : memref<8x8xf32, #tpu.memory_space<smem>>
    %79 = vector.broadcast %78 : f32 to vector<32x128xf32>
    %80 = arith.mulf %77, %79 : vector<32x128xf32>
    %81 = arith.addf %76, %80 : vector<32x128xf32>
    %82 = vector.extract_strided_slice %20 {offsets = [64, 0], sizes = [32, 128], strides = [1, 1]} : vector<256x128xf32> to vector<32x128xf32>
    %c1_28 = arith.constant 1 : index
    %c2_29 = arith.constant 2 : index
    %83 = memref.load %arg4[%c1_28, %c2_29] : memref<8x8xf32, #tpu.memory_space<smem>>
    %84 = vector.broadcast %83 : f32 to vector<32x128xf32>
    %85 = arith.mulf %82, %84 : vector<32x128xf32>
    %86 = arith.addf %81, %85 : vector<32x128xf32>
    %87 = vector.extract_strided_slice %20 {offsets = [96, 0], sizes = [32, 128], strides = [1, 1]} : vector<256x128xf32> to vector<32x128xf32>
    %c1_30 = arith.constant 1 : index
    %c3_31 = arith.constant 3 : index
    %88 = memref.load %arg4[%c1_30, %c3_31] : memref<8x8xf32, #tpu.memory_space<smem>>
    %89 = vector.broadcast %88 : f32 to vector<32x128xf32>
    %90 = arith.mulf %87, %89 : vector<32x128xf32>
    %91 = arith.addf %86, %90 : vector<32x128xf32>
    %92 = vector.extract_strided_slice %20 {offsets = [128, 0], sizes = [32, 128], strides = [1, 1]} : vector<256x128xf32> to vector<32x128xf32>
    %c1_32 = arith.constant 1 : index
    %c4_33 = arith.constant 4 : index
    %93 = memref.load %arg4[%c1_32, %c4_33] : memref<8x8xf32, #tpu.memory_space<smem>>
    %94 = vector.broadcast %93 : f32 to vector<32x128xf32>
    %95 = arith.mulf %92, %94 : vector<32x128xf32>
    %96 = arith.addf %91, %95 : vector<32x128xf32>
    %97 = vector.extract_strided_slice %20 {offsets = [160, 0], sizes = [32, 128], strides = [1, 1]} : vector<256x128xf32> to vector<32x128xf32>
    %c1_34 = arith.constant 1 : index
    %c5_35 = arith.constant 5 : index
    %98 = memref.load %arg4[%c1_34, %c5_35] : memref<8x8xf32, #tpu.memory_space<smem>>
    %99 = vector.broadcast %98 : f32 to vector<32x128xf32>
    %100 = arith.mulf %97, %99 : vector<32x128xf32>
    %101 = arith.addf %96, %100 : vector<32x128xf32>
    %102 = vector.extract_strided_slice %20 {offsets = [192, 0], sizes = [32, 128], strides = [1, 1]} : vector<256x128xf32> to vector<32x128xf32>
    %c1_36 = arith.constant 1 : index
    %c6_37 = arith.constant 6 : index
    %103 = memref.load %arg4[%c1_36, %c6_37] : memref<8x8xf32, #tpu.memory_space<smem>>
    %104 = vector.broadcast %103 : f32 to vector<32x128xf32>
    %105 = arith.mulf %102, %104 : vector<32x128xf32>
    %106 = arith.addf %101, %105 : vector<32x128xf32>
    %107 = vector.extract_strided_slice %20 {offsets = [224, 0], sizes = [32, 128], strides = [1, 1]} : vector<256x128xf32> to vector<32x128xf32>
    %c1_38 = arith.constant 1 : index
    %c7_39 = arith.constant 7 : index
    %108 = memref.load %arg4[%c1_38, %c7_39] : memref<8x8xf32, #tpu.memory_space<smem>>
    %109 = vector.broadcast %108 : f32 to vector<32x128xf32>
    %110 = arith.mulf %107, %109 : vector<32x128xf32>
    %111 = arith.addf %106, %110 : vector<32x128xf32>
    %cst_40 = arith.constant 0.000000e+00 : f32
    %112 = vector.broadcast %cst_40 : f32 to vector<32x128xf32>
    %113 = arith.cmpf ogt, %111, %112 : vector<32x128xf32>
    %114 = math.exp %111 : vector<32x128xf32>
    %cst_41 = arith.constant 1.000000e+00 : f32
    %115 = vector.broadcast %cst_41 : f32 to vector<32x128xf32>
    %116 = arith.subf %114, %115 : vector<32x128xf32>
    %117 = arith.select %113, %111, %116 : vector<32x128xi1>, vector<32x128xf32>
    %c32 = arith.constant 32 : index
    %c0_42 = arith.constant 0 : index
    %118 = vector.load %arg6[%c32, %c0_42] : memref<256x128xf32, #tpu.memory_space<vmem>>, vector<32x128xf32>
    tpu.vector_store %arg6[%c32, %c0_42], %117 {strides = array<i32>} : memref<256x128xf32, #tpu.memory_space<vmem>>, vector<32x128xf32>,
    %119 = vector.extract_strided_slice %20 {offsets = [0, 0], sizes = [32, 128], strides = [1, 1]} : vector<256x128xf32> to vector<32x128xf32>
    %c2_43 = arith.constant 2 : index
    %c0_44 = arith.constant 0 : index
    %120 = memref.load %arg4[%c2_43, %c0_44] : memref<8x8xf32, #tpu.memory_space<smem>>
    %121 = vector.broadcast %120 : f32 to vector<32x128xf32>
    %122 = arith.mulf %119, %121 : vector<32x128xf32>
    %c2_45 = arith.constant 2 : index
    %123 = memref.load %arg5[%c2_45] : memref<8xf32, #tpu.memory_space<smem>>
    %124 = vector.broadcast %123 : f32 to vector<32x128xf32>
    %125 = arith.addf %122, %124 : vector<32x128xf32>
    %126 = vector.extract_strided_slice %20 {offsets = [32, 0], sizes = [32, 128], strides = [1, 1]} : vector<256x128xf32> to vector<32x128xf32>
    %c2_46 = arith.constant 2 : index
    %c1_47 = arith.constant 1 : index
    %127 = memref.load %arg4[%c2_46, %c1_47] : memref<8x8xf32, #tpu.memory_space<smem>>
    %128 = vector.broadcast %127 : f32 to vector<32x128xf32>
    %129 = arith.mulf %126, %128 : vector<32x128xf32>
    %130 = arith.addf %125, %129 : vector<32x128xf32>
    %131 = vector.extract_strided_slice %20 {offsets = [64, 0], sizes = [32, 128], strides = [1, 1]} : vector<256x128xf32> to vector<32x128xf32>
    %c2_48 = arith.constant 2 : index
    %c2_49 = arith.constant 2 : index
    %132 = memref.load %arg4[%c2_48, %c2_49] : memref<8x8xf32, #tpu.memory_space<smem>>
    %133 = vector.broadcast %132 : f32 to vector<32x128xf32>
    %134 = arith.mulf %131, %133 : vector<32x128xf32>
    %135 = arith.addf %130, %134 : vector<32x128xf32>
    %136 = vector.extract_strided_slice %20 {offsets = [96, 0], sizes = [32, 128], strides = [1, 1]} : vector<256x128xf32> to vector<32x128xf32>
    %c2_50 = arith.constant 2 : index
    %c3_51 = arith.constant 3 : index
    %137 = memref.load %arg4[%c2_50, %c3_51] : memref<8x8xf32, #tpu.memory_space<smem>>
    %138 = vector.broadcast %137 : f32 to vector<32x128xf32>
    %139 = arith.mulf %136, %138 : vector<32x128xf32>
    %140 = arith.addf %135, %139 : vector<32x128xf32>
    %141 = vector.extract_strided_slice %20 {offsets = [128, 0], sizes = [32, 128], strides = [1, 1]} : vector<256x128xf32> to vector<32x128xf32>
    %c2_52 = arith.constant 2 : index
    %c4_53 = arith.constant 4 : index
    %142 = memref.load %arg4[%c2_52, %c4_53] : memref<8x8xf32, #tpu.memory_space<smem>>
    %143 = vector.broadcast %142 : f32 to vector<32x128xf32>
    %144 = arith.mulf %141, %143 : vector<32x128xf32>
    %145 = arith.addf %140, %144 : vector<32x128xf32>
    %146 = vector.extract_strided_slice %20 {offsets = [160, 0], sizes = [32, 128], strides = [1, 1]} : vector<256x128xf32> to vector<32x128xf32>
    %c2_54 = arith.constant 2 : index
    %c5_55 = arith.constant 5 : index
    %147 = memref.load %arg4[%c2_54, %c5_55] : memref<8x8xf32, #tpu.memory_space<smem>>
    %148 = vector.broadcast %147 : f32 to vector<32x128xf32>
    %149 = arith.mulf %146, %148 : vector<32x128xf32>
    %150 = arith.addf %145, %149 : vector<32x128xf32>
    %151 = vector.extract_strided_slice %20 {offsets = [192, 0], sizes = [32, 128], strides = [1, 1]} : vector<256x128xf32> to vector<32x128xf32>
    %c2_56 = arith.constant 2 : index
    %c6_57 = arith.constant 6 : index
    %152 = memref.load %arg4[%c2_56, %c6_57] : memref<8x8xf32, #tpu.memory_space<smem>>
    %153 = vector.broadcast %152 : f32 to vector<32x128xf32>
    %154 = arith.mulf %151, %153 : vector<32x128xf32>
    %155 = arith.addf %150, %154 : vector<32x128xf32>
    %156 = vector.extract_strided_slice %20 {offsets = [224, 0], sizes = [32, 128], strides = [1, 1]} : vector<256x128xf32> to vector<32x128xf32>
    %c2_58 = arith.constant 2 : index
    %c7_59 = arith.constant 7 : index
    %157 = memref.load %arg4[%c2_58, %c7_59] : memref<8x8xf32, #tpu.memory_space<smem>>
    %158 = vector.broadcast %157 : f32 to vector<32x128xf32>
    %159 = arith.mulf %156, %158 : vector<32x128xf32>
    %160 = arith.addf %155, %159 : vector<32x128xf32>
    %cst_60 = arith.constant 0.000000e+00 : f32
    %161 = vector.broadcast %cst_60 : f32 to vector<32x128xf32>
    %162 = arith.cmpf ogt, %160, %161 : vector<32x128xf32>
    %163 = math.exp %160 : vector<32x128xf32>
    %cst_61 = arith.constant 1.000000e+00 : f32
    %164 = vector.broadcast %cst_61 : f32 to vector<32x128xf32>
    %165 = arith.subf %163, %164 : vector<32x128xf32>
    %166 = arith.select %162, %160, %165 : vector<32x128xi1>, vector<32x128xf32>
    %c64 = arith.constant 64 : index
    %c0_62 = arith.constant 0 : index
    %167 = vector.load %arg6[%c64, %c0_62] : memref<256x128xf32, #tpu.memory_space<vmem>>, vector<32x128xf32>
    tpu.vector_store %arg6[%c64, %c0_62], %166 {strides = array<i32>} : memref<256x128xf32, #tpu.memory_space<vmem>>, vector<32x128xf32>,
    %168 = vector.extract_strided_slice %20 {offsets = [0, 0], sizes = [32, 128], strides = [1, 1]} : vector<256x128xf32> to vector<32x128xf32>
    %c3_63 = arith.constant 3 : index
    %c0_64 = arith.constant 0 : index
    %169 = memref.load %arg4[%c3_63, %c0_64] : memref<8x8xf32, #tpu.memory_space<smem>>
    %170 = vector.broadcast %169 : f32 to vector<32x128xf32>
    %171 = arith.mulf %168, %170 : vector<32x128xf32>
    %c3_65 = arith.constant 3 : index
    %172 = memref.load %arg5[%c3_65] : memref<8xf32, #tpu.memory_space<smem>>
    %173 = vector.broadcast %172 : f32 to vector<32x128xf32>
    %174 = arith.addf %171, %173 : vector<32x128xf32>
    %175 = vector.extract_strided_slice %20 {offsets = [32, 0], sizes = [32, 128], strides = [1, 1]} : vector<256x128xf32> to vector<32x128xf32>
    %c3_66 = arith.constant 3 : index
    %c1_67 = arith.constant 1 : index
    %176 = memref.load %arg4[%c3_66, %c1_67] : memref<8x8xf32, #tpu.memory_space<smem>>
    %177 = vector.broadcast %176 : f32 to vector<32x128xf32>
    %178 = arith.mulf %175, %177 : vector<32x128xf32>
    %179 = arith.addf %174, %178 : vector<32x128xf32>
    %180 = vector.extract_strided_slice %20 {offsets = [64, 0], sizes = [32, 128], strides = [1, 1]} : vector<256x128xf32> to vector<32x128xf32>
    %c3_68 = arith.constant 3 : index
    %c2_69 = arith.constant 2 : index
    %181 = memref.load %arg4[%c3_68, %c2_69] : memref<8x8xf32, #tpu.memory_space<smem>>
    %182 = vector.broadcast %181 : f32 to vector<32x128xf32>
    %183 = arith.mulf %180, %182 : vector<32x128xf32>
    %184 = arith.addf %179, %183 : vector<32x128xf32>
    %185 = vector.extract_strided_slice %20 {offsets = [96, 0], sizes = [32, 128], strides = [1, 1]} : vector<256x128xf32> to vector<32x128xf32>
    %c3_70 = arith.constant 3 : index
    %c3_71 = arith.constant 3 : index
    %186 = memref.load %arg4[%c3_70, %c3_71] : memref<8x8xf32, #tpu.memory_space<smem>>
    %187 = vector.broadcast %186 : f32 to vector<32x128xf32>
    %188 = arith.mulf %185, %187 : vector<32x128xf32>
    %189 = arith.addf %184, %188 : vector<32x128xf32>
    %190 = vector.extract_strided_slice %20 {offsets = [128, 0], sizes = [32, 128], strides = [1, 1]} : vector<256x128xf32> to vector<32x128xf32>
    %c3_72 = arith.constant 3 : index
    %c4_73 = arith.constant 4 : index
    %191 = memref.load %arg4[%c3_72, %c4_73] : memref<8x8xf32, #tpu.memory_space<smem>>
    %192 = vector.broadcast %191 : f32 to vector<32x128xf32>
    %193 = arith.mulf %190, %192 : vector<32x128xf32>
    %194 = arith.addf %189, %193 : vector<32x128xf32>
    %195 = vector.extract_strided_slice %20 {offsets = [160, 0], sizes = [32, 128], strides = [1, 1]} : vector<256x128xf32> to vector<32x128xf32>
    %c3_74 = arith.constant 3 : index
    %c5_75 = arith.constant 5 : index
    %196 = memref.load %arg4[%c3_74, %c5_75] : memref<8x8xf32, #tpu.memory_space<smem>>
    %197 = vector.broadcast %196 : f32 to vector<32x128xf32>
    %198 = arith.mulf %195, %197 : vector<32x128xf32>
    %199 = arith.addf %194, %198 : vector<32x128xf32>
    %200 = vector.extract_strided_slice %20 {offsets = [192, 0], sizes = [32, 128], strides = [1, 1]} : vector<256x128xf32> to vector<32x128xf32>
    %c3_76 = arith.constant 3 : index
    %c6_77 = arith.constant 6 : index
    %201 = memref.load %arg4[%c3_76, %c6_77] : memref<8x8xf32, #tpu.memory_space<smem>>
    %202 = vector.broadcast %201 : f32 to vector<32x128xf32>
    %203 = arith.mulf %200, %202 : vector<32x128xf32>
    %204 = arith.addf %199, %203 : vector<32x128xf32>
    %205 = vector.extract_strided_slice %20 {offsets = [224, 0], sizes = [32, 128], strides = [1, 1]} : vector<256x128xf32> to vector<32x128xf32>
    %c3_78 = arith.constant 3 : index
    %c7_79 = arith.constant 7 : index
    %206 = memref.load %arg4[%c3_78, %c7_79] : memref<8x8xf32, #tpu.memory_space<smem>>
    %207 = vector.broadcast %206 : f32 to vector<32x128xf32>
    %208 = arith.mulf %205, %207 : vector<32x128xf32>
    %209 = arith.addf %204, %208 : vector<32x128xf32>
    %cst_80 = arith.constant 0.000000e+00 : f32
    %210 = vector.broadcast %cst_80 : f32 to vector<32x128xf32>
    %211 = arith.cmpf ogt, %209, %210 : vector<32x128xf32>
    %212 = math.exp %209 : vector<32x128xf32>
    %cst_81 = arith.constant 1.000000e+00 : f32
    %213 = vector.broadcast %cst_81 : f32 to vector<32x128xf32>
    %214 = arith.subf %212, %213 : vector<32x128xf32>
    %215 = arith.select %211, %209, %214 : vector<32x128xi1>, vector<32x128xf32>
    %c96 = arith.constant 96 : index
    %c0_82 = arith.constant 0 : index
    %216 = vector.load %arg6[%c96, %c0_82] : memref<256x128xf32, #tpu.memory_space<vmem>>, vector<32x128xf32>
    tpu.vector_store %arg6[%c96, %c0_82], %215 {strides = array<i32>} : memref<256x128xf32, #tpu.memory_space<vmem>>, vector<32x128xf32>,
    %217 = vector.extract_strided_slice %20 {offsets = [0, 0], sizes = [32, 128], strides = [1, 1]} : vector<256x128xf32> to vector<32x128xf32>
    %c4_83 = arith.constant 4 : index
    %c0_84 = arith.constant 0 : index
    %218 = memref.load %arg4[%c4_83, %c0_84] : memref<8x8xf32, #tpu.memory_space<smem>>
    %219 = vector.broadcast %218 : f32 to vector<32x128xf32>
    %220 = arith.mulf %217, %219 : vector<32x128xf32>
    %c4_85 = arith.constant 4 : index
    %221 = memref.load %arg5[%c4_85] : memref<8xf32, #tpu.memory_space<smem>>
    %222 = vector.broadcast %221 : f32 to vector<32x128xf32>
    %223 = arith.addf %220, %222 : vector<32x128xf32>
    %224 = vector.extract_strided_slice %20 {offsets = [32, 0], sizes = [32, 128], strides = [1, 1]} : vector<256x128xf32> to vector<32x128xf32>
    %c4_86 = arith.constant 4 : index
    %c1_87 = arith.constant 1 : index
    %225 = memref.load %arg4[%c4_86, %c1_87] : memref<8x8xf32, #tpu.memory_space<smem>>
    %226 = vector.broadcast %225 : f32 to vector<32x128xf32>
    %227 = arith.mulf %224, %226 : vector<32x128xf32>
    %228 = arith.addf %223, %227 : vector<32x128xf32>
    %229 = vector.extract_strided_slice %20 {offsets = [64, 0], sizes = [32, 128], strides = [1, 1]} : vector<256x128xf32> to vector<32x128xf32>
    %c4_88 = arith.constant 4 : index
    %c2_89 = arith.constant 2 : index
    %230 = memref.load %arg4[%c4_88, %c2_89] : memref<8x8xf32, #tpu.memory_space<smem>>
    %231 = vector.broadcast %230 : f32 to vector<32x128xf32>
    %232 = arith.mulf %229, %231 : vector<32x128xf32>
    %233 = arith.addf %228, %232 : vector<32x128xf32>
    %234 = vector.extract_strided_slice %20 {offsets = [96, 0], sizes = [32, 128], strides = [1, 1]} : vector<256x128xf32> to vector<32x128xf32>
    %c4_90 = arith.constant 4 : index
    %c3_91 = arith.constant 3 : index
    %235 = memref.load %arg4[%c4_90, %c3_91] : memref<8x8xf32, #tpu.memory_space<smem>>
    %236 = vector.broadcast %235 : f32 to vector<32x128xf32>
    %237 = arith.mulf %234, %236 : vector<32x128xf32>
    %238 = arith.addf %233, %237 : vector<32x128xf32>
    %239 = vector.extract_strided_slice %20 {offsets = [128, 0], sizes = [32, 128], strides = [1, 1]} : vector<256x128xf32> to vector<32x128xf32>
    %c4_92 = arith.constant 4 : index
    %c4_93 = arith.constant 4 : index
    %240 = memref.load %arg4[%c4_92, %c4_93] : memref<8x8xf32, #tpu.memory_space<smem>>
    %241 = vector.broadcast %240 : f32 to vector<32x128xf32>
    %242 = arith.mulf %239, %241 : vector<32x128xf32>
    %243 = arith.addf %238, %242 : vector<32x128xf32>
    %244 = vector.extract_strided_slice %20 {offsets = [160, 0], sizes = [32, 128], strides = [1, 1]} : vector<256x128xf32> to vector<32x128xf32>
    %c4_94 = arith.constant 4 : index
    %c5_95 = arith.constant 5 : index
    %245 = memref.load %arg4[%c4_94, %c5_95] : memref<8x8xf32, #tpu.memory_space<smem>>
    %246 = vector.broadcast %245 : f32 to vector<32x128xf32>
    %247 = arith.mulf %244, %246 : vector<32x128xf32>
    %248 = arith.addf %243, %247 : vector<32x128xf32>
    %249 = vector.extract_strided_slice %20 {offsets = [192, 0], sizes = [32, 128], strides = [1, 1]} : vector<256x128xf32> to vector<32x128xf32>
    %c4_96 = arith.constant 4 : index
    %c6_97 = arith.constant 6 : index
    %250 = memref.load %arg4[%c4_96, %c6_97] : memref<8x8xf32, #tpu.memory_space<smem>>
    %251 = vector.broadcast %250 : f32 to vector<32x128xf32>
    %252 = arith.mulf %249, %251 : vector<32x128xf32>
    %253 = arith.addf %248, %252 : vector<32x128xf32>
    %254 = vector.extract_strided_slice %20 {offsets = [224, 0], sizes = [32, 128], strides = [1, 1]} : vector<256x128xf32> to vector<32x128xf32>
    %c4_98 = arith.constant 4 : index
    %c7_99 = arith.constant 7 : index
    %255 = memref.load %arg4[%c4_98, %c7_99] : memref<8x8xf32, #tpu.memory_space<smem>>
    %256 = vector.broadcast %255 : f32 to vector<32x128xf32>
    %257 = arith.mulf %254, %256 : vector<32x128xf32>
    %258 = arith.addf %253, %257 : vector<32x128xf32>
    %cst_100 = arith.constant 0.000000e+00 : f32
    %259 = vector.broadcast %cst_100 : f32 to vector<32x128xf32>
    %260 = arith.cmpf ogt, %258, %259 : vector<32x128xf32>
    %261 = math.exp %258 : vector<32x128xf32>
    %cst_101 = arith.constant 1.000000e+00 : f32
    %262 = vector.broadcast %cst_101 : f32 to vector<32x128xf32>
    %263 = arith.subf %261, %262 : vector<32x128xf32>
    %264 = arith.select %260, %258, %263 : vector<32x128xi1>, vector<32x128xf32>
    %c128 = arith.constant 128 : index
    %c0_102 = arith.constant 0 : index
    %265 = vector.load %arg6[%c128, %c0_102] : memref<256x128xf32, #tpu.memory_space<vmem>>, vector<32x128xf32>
    tpu.vector_store %arg6[%c128, %c0_102], %264 {strides = array<i32>} : memref<256x128xf32, #tpu.memory_space<vmem>>, vector<32x128xf32>,
    %266 = vector.extract_strided_slice %20 {offsets = [0, 0], sizes = [32, 128], strides = [1, 1]} : vector<256x128xf32> to vector<32x128xf32>
    %c5_103 = arith.constant 5 : index
    %c0_104 = arith.constant 0 : index
    %267 = memref.load %arg4[%c5_103, %c0_104] : memref<8x8xf32, #tpu.memory_space<smem>>
    %268 = vector.broadcast %267 : f32 to vector<32x128xf32>
    %269 = arith.mulf %266, %268 : vector<32x128xf32>
    %c5_105 = arith.constant 5 : index
    %270 = memref.load %arg5[%c5_105] : memref<8xf32, #tpu.memory_space<smem>>
    %271 = vector.broadcast %270 : f32 to vector<32x128xf32>
    %272 = arith.addf %269, %271 : vector<32x128xf32>
    %273 = vector.extract_strided_slice %20 {offsets = [32, 0], sizes = [32, 128], strides = [1, 1]} : vector<256x128xf32> to vector<32x128xf32>
    %c5_106 = arith.constant 5 : index
    %c1_107 = arith.constant 1 : index
    %274 = memref.load %arg4[%c5_106, %c1_107] : memref<8x8xf32, #tpu.memory_space<smem>>
    %275 = vector.broadcast %274 : f32 to vector<32x128xf32>
    %276 = arith.mulf %273, %275 : vector<32x128xf32>
    %277 = arith.addf %272, %276 : vector<32x128xf32>
    %278 = vector.extract_strided_slice %20 {offsets = [64, 0], sizes = [32, 128], strides = [1, 1]} : vector<256x128xf32> to vector<32x128xf32>
    %c5_108 = arith.constant 5 : index
    %c2_109 = arith.constant 2 : index
    %279 = memref.load %arg4[%c5_108, %c2_109] : memref<8x8xf32, #tpu.memory_space<smem>>
    %280 = vector.broadcast %279 : f32 to vector<32x128xf32>
    %281 = arith.mulf %278, %280 : vector<32x128xf32>
    %282 = arith.addf %277, %281 : vector<32x128xf32>
    %283 = vector.extract_strided_slice %20 {offsets = [96, 0], sizes = [32, 128], strides = [1, 1]} : vector<256x128xf32> to vector<32x128xf32>
    %c5_110 = arith.constant 5 : index
    %c3_111 = arith.constant 3 : index
    %284 = memref.load %arg4[%c5_110, %c3_111] : memref<8x8xf32, #tpu.memory_space<smem>>
    %285 = vector.broadcast %284 : f32 to vector<32x128xf32>
    %286 = arith.mulf %283, %285 : vector<32x128xf32>
    %287 = arith.addf %282, %286 : vector<32x128xf32>
    %288 = vector.extract_strided_slice %20 {offsets = [128, 0], sizes = [32, 128], strides = [1, 1]} : vector<256x128xf32> to vector<32x128xf32>
    %c5_112 = arith.constant 5 : index
    %c4_113 = arith.constant 4 : index
    %289 = memref.load %arg4[%c5_112, %c4_113] : memref<8x8xf32, #tpu.memory_space<smem>>
    %290 = vector.broadcast %289 : f32 to vector<32x128xf32>
    %291 = arith.mulf %288, %290 : vector<32x128xf32>
    %292 = arith.addf %287, %291 : vector<32x128xf32>
    %293 = vector.extract_strided_slice %20 {offsets = [160, 0], sizes = [32, 128], strides = [1, 1]} : vector<256x128xf32> to vector<32x128xf32>
    %c5_114 = arith.constant 5 : index
    %c5_115 = arith.constant 5 : index
    %294 = memref.load %arg4[%c5_114, %c5_115] : memref<8x8xf32, #tpu.memory_space<smem>>
    %295 = vector.broadcast %294 : f32 to vector<32x128xf32>
    %296 = arith.mulf %293, %295 : vector<32x128xf32>
    %297 = arith.addf %292, %296 : vector<32x128xf32>
    %298 = vector.extract_strided_slice %20 {offsets = [192, 0], sizes = [32, 128], strides = [1, 1]} : vector<256x128xf32> to vector<32x128xf32>
    %c5_116 = arith.constant 5 : index
    %c6_117 = arith.constant 6 : index
    %299 = memref.load %arg4[%c5_116, %c6_117] : memref<8x8xf32, #tpu.memory_space<smem>>
    %300 = vector.broadcast %299 : f32 to vector<32x128xf32>
    %301 = arith.mulf %298, %300 : vector<32x128xf32>
    %302 = arith.addf %297, %301 : vector<32x128xf32>
    %303 = vector.extract_strided_slice %20 {offsets = [224, 0], sizes = [32, 128], strides = [1, 1]} : vector<256x128xf32> to vector<32x128xf32>
    %c5_118 = arith.constant 5 : index
    %c7_119 = arith.constant 7 : index
    %304 = memref.load %arg4[%c5_118, %c7_119] : memref<8x8xf32, #tpu.memory_space<smem>>
    %305 = vector.broadcast %304 : f32 to vector<32x128xf32>
    %306 = arith.mulf %303, %305 : vector<32x128xf32>
    %307 = arith.addf %302, %306 : vector<32x128xf32>
    %cst_120 = arith.constant 0.000000e+00 : f32
    %308 = vector.broadcast %cst_120 : f32 to vector<32x128xf32>
    %309 = arith.cmpf ogt, %307, %308 : vector<32x128xf32>
    %310 = math.exp %307 : vector<32x128xf32>
    %cst_121 = arith.constant 1.000000e+00 : f32
    %311 = vector.broadcast %cst_121 : f32 to vector<32x128xf32>
    %312 = arith.subf %310, %311 : vector<32x128xf32>
    %313 = arith.select %309, %307, %312 : vector<32x128xi1>, vector<32x128xf32>
    %c160 = arith.constant 160 : index
    %c0_122 = arith.constant 0 : index
    %314 = vector.load %arg6[%c160, %c0_122] : memref<256x128xf32, #tpu.memory_space<vmem>>, vector<32x128xf32>
    tpu.vector_store %arg6[%c160, %c0_122], %313 {strides = array<i32>} : memref<256x128xf32, #tpu.memory_space<vmem>>, vector<32x128xf32>,
    %315 = vector.extract_strided_slice %20 {offsets = [0, 0], sizes = [32, 128], strides = [1, 1]} : vector<256x128xf32> to vector<32x128xf32>
    %c6_123 = arith.constant 6 : index
    %c0_124 = arith.constant 0 : index
    %316 = memref.load %arg4[%c6_123, %c0_124] : memref<8x8xf32, #tpu.memory_space<smem>>
    %317 = vector.broadcast %316 : f32 to vector<32x128xf32>
    %318 = arith.mulf %315, %317 : vector<32x128xf32>
    %c6_125 = arith.constant 6 : index
    %319 = memref.load %arg5[%c6_125] : memref<8xf32, #tpu.memory_space<smem>>
    %320 = vector.broadcast %319 : f32 to vector<32x128xf32>
    %321 = arith.addf %318, %320 : vector<32x128xf32>
    %322 = vector.extract_strided_slice %20 {offsets = [32, 0], sizes = [32, 128], strides = [1, 1]} : vector<256x128xf32> to vector<32x128xf32>
    %c6_126 = arith.constant 6 : index
    %c1_127 = arith.constant 1 : index
    %323 = memref.load %arg4[%c6_126, %c1_127] : memref<8x8xf32, #tpu.memory_space<smem>>
    %324 = vector.broadcast %323 : f32 to vector<32x128xf32>
    %325 = arith.mulf %322, %324 : vector<32x128xf32>
    %326 = arith.addf %321, %325 : vector<32x128xf32>
    %327 = vector.extract_strided_slice %20 {offsets = [64, 0], sizes = [32, 128], strides = [1, 1]} : vector<256x128xf32> to vector<32x128xf32>
    %c6_128 = arith.constant 6 : index
    %c2_129 = arith.constant 2 : index
    %328 = memref.load %arg4[%c6_128, %c2_129] : memref<8x8xf32, #tpu.memory_space<smem>>
    %329 = vector.broadcast %328 : f32 to vector<32x128xf32>
    %330 = arith.mulf %327, %329 : vector<32x128xf32>
    %331 = arith.addf %326, %330 : vector<32x128xf32>
    %332 = vector.extract_strided_slice %20 {offsets = [96, 0], sizes = [32, 128], strides = [1, 1]} : vector<256x128xf32> to vector<32x128xf32>
    %c6_130 = arith.constant 6 : index
    %c3_131 = arith.constant 3 : index
    %333 = memref.load %arg4[%c6_130, %c3_131] : memref<8x8xf32, #tpu.memory_space<smem>>
    %334 = vector.broadcast %333 : f32 to vector<32x128xf32>
    %335 = arith.mulf %332, %334 : vector<32x128xf32>
    %336 = arith.addf %331, %335 : vector<32x128xf32>
    %337 = vector.extract_strided_slice %20 {offsets = [128, 0], sizes = [32, 128], strides = [1, 1]} : vector<256x128xf32> to vector<32x128xf32>
    %c6_132 = arith.constant 6 : index
    %c4_133 = arith.constant 4 : index
    %338 = memref.load %arg4[%c6_132, %c4_133] : memref<8x8xf32, #tpu.memory_space<smem>>
    %339 = vector.broadcast %338 : f32 to vector<32x128xf32>
    %340 = arith.mulf %337, %339 : vector<32x128xf32>
    %341 = arith.addf %336, %340 : vector<32x128xf32>
    %342 = vector.extract_strided_slice %20 {offsets = [160, 0], sizes = [32, 128], strides = [1, 1]} : vector<256x128xf32> to vector<32x128xf32>
    %c6_134 = arith.constant 6 : index
    %c5_135 = arith.constant 5 : index
    %343 = memref.load %arg4[%c6_134, %c5_135] : memref<8x8xf32, #tpu.memory_space<smem>>
    %344 = vector.broadcast %343 : f32 to vector<32x128xf32>
    %345 = arith.mulf %342, %344 : vector<32x128xf32>
    %346 = arith.addf %341, %345 : vector<32x128xf32>
    %347 = vector.extract_strided_slice %20 {offsets = [192, 0], sizes = [32, 128], strides = [1, 1]} : vector<256x128xf32> to vector<32x128xf32>
    %c6_136 = arith.constant 6 : index
    %c6_137 = arith.constant 6 : index
    %348 = memref.load %arg4[%c6_136, %c6_137] : memref<8x8xf32, #tpu.memory_space<smem>>
    %349 = vector.broadcast %348 : f32 to vector<32x128xf32>
    %350 = arith.mulf %347, %349 : vector<32x128xf32>
    %351 = arith.addf %346, %350 : vector<32x128xf32>
    %352 = vector.extract_strided_slice %20 {offsets = [224, 0], sizes = [32, 128], strides = [1, 1]} : vector<256x128xf32> to vector<32x128xf32>
    %c6_138 = arith.constant 6 : index
    %c7_139 = arith.constant 7 : index
    %353 = memref.load %arg4[%c6_138, %c7_139] : memref<8x8xf32, #tpu.memory_space<smem>>
    %354 = vector.broadcast %353 : f32 to vector<32x128xf32>
    %355 = arith.mulf %352, %354 : vector<32x128xf32>
    %356 = arith.addf %351, %355 : vector<32x128xf32>
    %cst_140 = arith.constant 0.000000e+00 : f32
    %357 = vector.broadcast %cst_140 : f32 to vector<32x128xf32>
    %358 = arith.cmpf ogt, %356, %357 : vector<32x128xf32>
    %359 = math.exp %356 : vector<32x128xf32>
    %cst_141 = arith.constant 1.000000e+00 : f32
    %360 = vector.broadcast %cst_141 : f32 to vector<32x128xf32>
    %361 = arith.subf %359, %360 : vector<32x128xf32>
    %362 = arith.select %358, %356, %361 : vector<32x128xi1>, vector<32x128xf32>
    %c192 = arith.constant 192 : index
    %c0_142 = arith.constant 0 : index
    %363 = vector.load %arg6[%c192, %c0_142] : memref<256x128xf32, #tpu.memory_space<vmem>>, vector<32x128xf32>
    tpu.vector_store %arg6[%c192, %c0_142], %362 {strides = array<i32>} : memref<256x128xf32, #tpu.memory_space<vmem>>, vector<32x128xf32>,
    %364 = vector.extract_strided_slice %20 {offsets = [0, 0], sizes = [32, 128], strides = [1, 1]} : vector<256x128xf32> to vector<32x128xf32>
    %c7_143 = arith.constant 7 : index
    %c0_144 = arith.constant 0 : index
    %365 = memref.load %arg4[%c7_143, %c0_144] : memref<8x8xf32, #tpu.memory_space<smem>>
    %366 = vector.broadcast %365 : f32 to vector<32x128xf32>
    %367 = arith.mulf %364, %366 : vector<32x128xf32>
    %c7_145 = arith.constant 7 : index
    %368 = memref.load %arg5[%c7_145] : memref<8xf32, #tpu.memory_space<smem>>
    %369 = vector.broadcast %368 : f32 to vector<32x128xf32>
    %370 = arith.addf %367, %369 : vector<32x128xf32>
    %371 = vector.extract_strided_slice %20 {offsets = [32, 0], sizes = [32, 128], strides = [1, 1]} : vector<256x128xf32> to vector<32x128xf32>
    %c7_146 = arith.constant 7 : index
    %c1_147 = arith.constant 1 : index
    %372 = memref.load %arg4[%c7_146, %c1_147] : memref<8x8xf32, #tpu.memory_space<smem>>
    %373 = vector.broadcast %372 : f32 to vector<32x128xf32>
    %374 = arith.mulf %371, %373 : vector<32x128xf32>
    %375 = arith.addf %370, %374 : vector<32x128xf32>
    %376 = vector.extract_strided_slice %20 {offsets = [64, 0], sizes = [32, 128], strides = [1, 1]} : vector<256x128xf32> to vector<32x128xf32>
    %c7_148 = arith.constant 7 : index
    %c2_149 = arith.constant 2 : index
    %377 = memref.load %arg4[%c7_148, %c2_149] : memref<8x8xf32, #tpu.memory_space<smem>>
    %378 = vector.broadcast %377 : f32 to vector<32x128xf32>
    %379 = arith.mulf %376, %378 : vector<32x128xf32>
    %380 = arith.addf %375, %379 : vector<32x128xf32>
    %381 = vector.extract_strided_slice %20 {offsets = [96, 0], sizes = [32, 128], strides = [1, 1]} : vector<256x128xf32> to vector<32x128xf32>
    %c7_150 = arith.constant 7 : index
    %c3_151 = arith.constant 3 : index
    %382 = memref.load %arg4[%c7_150, %c3_151] : memref<8x8xf32, #tpu.memory_space<smem>>
    %383 = vector.broadcast %382 : f32 to vector<32x128xf32>
    %384 = arith.mulf %381, %383 : vector<32x128xf32>
    %385 = arith.addf %380, %384 : vector<32x128xf32>
    %386 = vector.extract_strided_slice %20 {offsets = [128, 0], sizes = [32, 128], strides = [1, 1]} : vector<256x128xf32> to vector<32x128xf32>
    %c7_152 = arith.constant 7 : index
    %c4_153 = arith.constant 4 : index
    %387 = memref.load %arg4[%c7_152, %c4_153] : memref<8x8xf32, #tpu.memory_space<smem>>
    %388 = vector.broadcast %387 : f32 to vector<32x128xf32>
    %389 = arith.mulf %386, %388 : vector<32x128xf32>
    %390 = arith.addf %385, %389 : vector<32x128xf32>
    %391 = vector.extract_strided_slice %20 {offsets = [160, 0], sizes = [32, 128], strides = [1, 1]} : vector<256x128xf32> to vector<32x128xf32>
    %c7_154 = arith.constant 7 : index
    %c5_155 = arith.constant 5 : index
    %392 = memref.load %arg4[%c7_154, %c5_155] : memref<8x8xf32, #tpu.memory_space<smem>>
    %393 = vector.broadcast %392 : f32 to vector<32x128xf32>
    %394 = arith.mulf %391, %393 : vector<32x128xf32>
    %395 = arith.addf %390, %394 : vector<32x128xf32>
    %396 = vector.extract_strided_slice %20 {offsets = [192, 0], sizes = [32, 128], strides = [1, 1]} : vector<256x128xf32> to vector<32x128xf32>
    %c7_156 = arith.constant 7 : index
    %c6_157 = arith.constant 6 : index
    %397 = memref.load %arg4[%c7_156, %c6_157] : memref<8x8xf32, #tpu.memory_space<smem>>
    %398 = vector.broadcast %397 : f32 to vector<32x128xf32>
    %399 = arith.mulf %396, %398 : vector<32x128xf32>
    %400 = arith.addf %395, %399 : vector<32x128xf32>
    %401 = vector.extract_strided_slice %20 {offsets = [224, 0], sizes = [32, 128], strides = [1, 1]} : vector<256x128xf32> to vector<32x128xf32>
    %c7_158 = arith.constant 7 : index
    %c7_159 = arith.constant 7 : index
    %402 = memref.load %arg4[%c7_158, %c7_159] : memref<8x8xf32, #tpu.memory_space<smem>>
    %403 = vector.broadcast %402 : f32 to vector<32x128xf32>
    %404 = arith.mulf %401, %403 : vector<32x128xf32>
    %405 = arith.addf %400, %404 : vector<32x128xf32>
    %cst_160 = arith.constant 0.000000e+00 : f32
    %406 = vector.broadcast %cst_160 : f32 to vector<32x128xf32>
    %407 = arith.cmpf ogt, %405, %406 : vector<32x128xf32>
    %408 = math.exp %405 : vector<32x128xf32>
    %cst_161 = arith.constant 1.000000e+00 : f32
    %409 = vector.broadcast %cst_161 : f32 to vector<32x128xf32>
    %410 = arith.subf %408, %409 : vector<32x128xf32>
    %411 = arith.select %407, %405, %410 : vector<32x128xi1>, vector<32x128xf32>
    %c224 = arith.constant 224 : index
    %c0_162 = arith.constant 0 : index
    %412 = vector.load %arg6[%c224, %c0_162] : memref<256x128xf32, #tpu.memory_space<vmem>>, vector<32x128xf32>
    tpu.vector_store %arg6[%c224, %c0_162], %411 {strides = array<i32>} : memref<256x128xf32, #tpu.memory_space<vmem>>, vector<32x128xf32>,
    return
  }
  func.func @transform_0(%arg0: i32) -> (i32, i32) {
    %c0_i32 = arith.constant 0 : i32
    %c0_i32_0 = arith.constant 0 : i32
    return %arg0, %c0_i32 : i32, i32
  }
  func.func @transform_1(%arg0: i32) -> (i32, i32) {
    %c0_i32 = arith.constant 0 : i32
    %c0_i32_0 = arith.constant 0 : i32
    %c0_i32_1 = arith.constant 0 : i32
    return %c0_i32, %c0_i32_0 : i32, i32
  }
  func.func @transform_2(%arg0: i32) -> (i32, i32) {
    %c0_i32 = arith.constant 0 : i32
    %c0_i32_0 = arith.constant 0 : i32
    %c0_i32_1 = arith.constant 0 : i32
    return %c0_i32, %c0_i32_0 : i32, i32
  }
  func.func @transform_3(%arg0: i32) -> (i32, i32) {
    %c0_i32 = arith.constant 0 : i32
    %c0_i32_0 = arith.constant 0 : i32
    %c0_i32_1 = arith.constant 0 : i32
    return %c0_i32, %c0_i32_0 : i32, i32
  }
  func.func @transform_4(%arg0: i32) -> i32 {
    %c0_i32 = arith.constant 0 : i32
    %c0_i32_0 = arith.constant 0 : i32
    return %c0_i32 : i32
  }
  func.func @transform_5(%arg0: i32) -> (i32, i32) {
    %c0_i32 = arith.constant 0 : i32
    %c0_i32_0 = arith.constant 0 : i32
    return %arg0, %c0_i32 : i32, i32
  }
}

</mosaic_0001>

<llo_original>
// kernel: tpu_custom_call.1
$region0: #{tpu_custom_call.1}
  #allocation0 [shape = 'u32[]', space=smem, size = 0x4, offset = 0x4, fixed_abs, tag = 'smem constant byte address 0x4 - core index']
  #allocation1 [shape = 'u32[72,128]{1,0:T(1,128)}', space=vmem, size = 0x9000, scoped, tag = 'internal scratch']
  %s0 = inlined_call_operand.hbm [shape: bf16[512,128], index: 0, kind: input, shape index: {}]
  %s1 = inlined_call_operand.hbm [shape: bf16[128,256], index: 1, kind: input, shape index: {}]
  %s2 = inlined_call_operand.hbm [shape: f32[1,256], index: 2, kind: input, shape index: {}]
  %s3 = inlined_call_operand.hbm [shape: f32[8,8], index: 3, kind: input, shape index: {}]
  %s4 = inlined_call_operand.vmem [shape: f32[8], index: 4, kind: input, shape index: {}]
  %s5 = inlined_call_operand.hbm [shape: f32[512,128], index: 5, kind: output, shape index: {}]
  %s6 = sld [smem:[#allocation0]]
  $region73: #{tpu_custom_call.1} parent=0
    _
  %s8 = ssub.s32 1, %s6
  %s9 = scalar_select 0, %s8, %s6
  $region1: #{tpu_custom_call.1} parent=0
    #allocation2 [shape = 'u8[131072]{0}', space=vmem, size = 0x20000, scoped, tag = 'input window, operand 0']
    #allocation3 [shape = 's32[2]{0}', space=sflag, size = 0x8, scoped, tag = 'scoped memory for tpu_custom_call.1']
    #allocation4 [shape = 's32[2]{0}', space=sflag, size = 0x8, scoped, tag = 'scoped memory for tpu_custom_call.1']
    #allocation5 [shape = 's32[2]{0}', space=sflag, size = 0x8, scoped, tag = 'scoped memory for tpu_custom_call.1']
    #allocation6 [shape = 's32[2]{0}', space=sflag, size = 0x8, scoped, tag = 'scoped memory for tpu_custom_call.1']
    #allocation7 [shape = 'u8[65536]{0}', space=vmem, size = 0x10000, scoped, tag = 'input window, operand 1, single buffered']
    #allocation8 [shape = 's32[1]{0}', space=sflag, size = 0x4, scoped, tag = 'scoped memory for tpu_custom_call.1']
    #allocation9 [shape = 'u8[1024]{0}', space=vmem, size = 0x400, scoped, tag = 'input window, operand 2, single buffered']
    #allocation10 [shape = 'u8[4096]{0}', space=smem, size = 0x1000, scoped, tag = 'input window, operand 3, single buffered']
    #allocation11 [shape = 'u8[512]{0}', space=smem, size = 0x200, scoped, tag = 'input window, operand 4, single buffered']
    #allocation12 [shape = 'u8[262144]{0}', space=vmem, size = 0x40000, scoped, tag = 'output window, operand 0']
    %10 = vsyncpa [#allocation3], 0
    %s11 = scalar_lea.sflag [#allocation3], 1
    %12 = vsyncpa %s11, 0
    %13 = vsyncpa [#allocation8], 0
    %14 = vsyncpa [#allocation5], 0
    %15 = vsyncpa [#allocation6], 0
    %16 = vsyncpa [#allocation4], 0
    %s17 = scalar_lea.sflag [#allocation4], 1
    %18 = vsyncpa %s17, 0
    loop: start=0, step=1, limit=4
    $region2: #{tpu_custom_call.1} parent=1 // loop_pre_header
      _
    $region3: #{tpu_custom_call.1} parent=1 // loop_header
      %s20 = sphi 0, %s24
      %p21 = scmp.ge.s32.totalorder %s20, 4
      %s30 = sphi 0, %s32
      %s33 = sphi 0, %s30
      %s34 = sphi 0, %s33
      %s50 = sphi 0, %s34
      %s54 = sphi 0, %s54
      %s56 = sphi 0, %s54
      %s57 = sphi 0, %s56
      %s71 = sphi 0, %s57
      %s75 = sphi 0, %s75
      %s77 = sphi 0, %s75
      %s78 = sphi 0, %s77
      %s92 = sphi 0, %s78
      %s96 = sphi 0, %s96
      %s98 = sphi 0, %s96
      %s99 = sphi 0, %s98
      %s113 = sphi 0, %s99
      %s117 = sphi 0, %s117
      %s119 = sphi 0, %s117
      %s120 = sphi 0, %s119
      %s134 = sphi 0, %s120
      %s140 = sphi 0, %s142
      %s143 = sphi 0, %s140
      %s144 = sphi 0, %s143
      %s160 = sphi 0, %s144
    $region4: #{tpu_custom_call.1} parent=1 // loop_header_branch
      %23 = sbr.rel (%p21) target = $region8
    $region5: #{tpu_custom_call.1} parent=1 // loop_body
      %s25 = ssub.s32 %s20, 1
      %s26 = ssub.s32 %s20, 2
      %s27 = sadd.s32 %s20, 1
      %s28 = ssub.s32 %s20, %s27
      %p29 = scmp.eq.s32.totalorder %s28, 0
      %s31 = sadd.s32 %s30, 1
      %s32 = scalar_select %p29, %s30, %s31
      %p35 = pneg %p29
      %p36 = scmp.eq.s32.totalorder %s20, 1
      %p37 = por %p35, %p36
      %p38 = scmp.ne.s32.totalorder %s30, %s33
      %p39 = scmp.eq.s32.totalorder %s20, 0
      %p40 = por %p38, %p39
      %p41 = scmp.ne.s32.totalorder %s30, %s33
      %p42 = scmp.eq.s32.totalorder %s25, 1
      %p43 = por %p41, %p42
      %p44 = scmp.ne.s32.totalorder %s33, %s34
      %p45 = scmp.eq.s32.totalorder %s25, 0
      %p46 = por %p44, %p45
      %p47 = scmp.ne.s32.totalorder %s33, %s34
      %p48 = scmp.eq.s32.totalorder %s26, 1
      %p49 = por %p47, %p48
      %p51 = scmp.ne.s32.totalorder %s34, %s50
      %p52 = scmp.eq.s32.totalorder %s26, 0
      %p53 = por %p51, %p52
      %s55 = sadd.s32 %s54, 1
      %p58 = scmp.eq.s32.totalorder %s20, 1
      %p59 = scmp.ne.s32.totalorder %s54, %s56
      %p60 = scmp.eq.s32.totalorder %s20, 0
      %p61 = por %p59, %p60
      %p62 = scmp.ne.s32.totalorder %s54, %s56
      %p63 = scmp.eq.s32.totalorder %s25, 1
      %p64 = por %p62, %p63
      %p65 = scmp.ne.s32.totalorder %s56, %s57
      %p66 = scmp.eq.s32.totalorder %s25, 0
      %p67 = por %p65, %p66
      %p68 = scmp.ne.s32.totalorder %s56, %s57
      %p69 = scmp.eq.s32.totalorder %s26, 1
      %p70 = por %p68, %p69
      %p72 = scmp.ne.s32.totalorder %s57, %s71
      %p73 = scmp.eq.s32.totalorder %s26, 0
      %p74 = por %p72, %p73
      %s76 = sadd.s32 %s75, 1
      %p79 = scmp.eq.s32.totalorder %s20, 1
      %p80 = scmp.ne.s32.totalorder %s75, %s77
      %p81 = scmp.eq.s32.totalorder %s20, 0
      %p82 = por %p80, %p81
      %p83 = scmp.ne.s32.totalorder %s75, %s77
      %p84 = scmp.eq.s32.totalorder %s25, 1
      %p85 = por %p83, %p84
      %p86 = scmp.ne.s32.totalorder %s77, %s78
      %p87 = scmp.eq.s32.totalorder %s25, 0
      %p88 = por %p86, %p87
      %p89 = scmp.ne.s32.totalorder %s77, %s78
      %p90 = scmp.eq.s32.totalorder %s26, 1
      %p91 = por %p89, %p90
      %p93 = scmp.ne.s32.totalorder %s78, %s92
      %p94 = scmp.eq.s32.totalorder %s26, 0
      %p95 = por %p93, %p94
      %s97 = sadd.s32 %s96, 1
      %p100 = scmp.eq.s32.totalorder %s20, 1
      %p101 = scmp.ne.s32.totalorder %s96, %s98
      %p102 = scmp.eq.s32.totalorder %s20, 0
      %p103 = por %p101, %p102
      %p104 = scmp.ne.s32.totalorder %s96, %s98
      %p105 = scmp.eq.s32.totalorder %s25, 1
      %p106 = por %p104, %p105
      %p107 = scmp.ne.s32.totalorder %s98, %s99
      %p108 = scmp.eq.s32.totalorder %s25, 0
      %p109 = por %p107, %p108
      %p110 = scmp.ne.s32.totalorder %s98, %s99
      %p111 = scmp.eq.s32.totalorder %s26, 1
      %p112 = por %p110, %p111
      %p114 = scmp.ne.s32.totalorder %s99, %s113
      %p115 = scmp.eq.s32.totalorder %s26, 0
      %p116 = por %p114, %p115
      %s118 = sadd.s32 %s117, 1
      %p121 = scmp.eq.s32.totalorder %s20, 1
      %p122 = scmp.ne.s32.totalorder %s117, %s119
      %p123 = scmp.eq.s32.totalorder %s20, 0
      %p124 = por %p122, %p123
      %p125 = scmp.ne.s32.totalorder %s117, %s119
      %p126 = scmp.eq.s32.totalorder %s25, 1
      %p127 = por %p125, %p126
      %p128 = scmp.ne.s32.totalorder %s119, %s120
      %p129 = scmp.eq.s32.totalorder %s25, 0
      %p130 = por %p128, %p129
      %p131 = scmp.ne.s32.totalorder %s119, %s120
      %p132 = scmp.eq.s32.totalorder %s26, 1
      %p133 = por %p131, %p132
      %p135 = scmp.ne.s32.totalorder %s120, %s134
      %p136 = scmp.eq.s32.totalorder %s26, 0
      %p137 = por %p135, %p136
      %s138 = ssub.s32 %s20, %s27
      %p139 = scmp.eq.s32.totalorder %s138, 0
      %s141 = sadd.s32 %s140, 1
      %s142 = scalar_select %p139, %s140, %s141
      %p145 = pneg %p139
      %p146 = scmp.eq.s32.totalorder %s20, 1
      %p147 = por %p145, %p146
      %p148 = scmp.ne.s32.totalorder %s140, %s143
      %p149 = scmp.eq.s32.totalorder %s20, 0
      %p150 = por %p148, %p149
      %p151 = scmp.ne.s32.totalorder %s140, %s143
      %p152 = scmp.eq.s32.totalorder %s25, 1
      %p153 = por %p151, %p152
      %p154 = scmp.ne.s32.totalorder %s143, %s144
      %p155 = scmp.eq.s32.totalorder %s25, 0
      %p156 = por %p154, %p155
      %p157 = scmp.ne.s32.totalorder %s143, %s144
      %p158 = scmp.eq.s32.totalorder %s26, 1
      %p159 = por %p157, %p158
      %p161 = scmp.ne.s32.totalorder %s144, %s160
      %p162 = scmp.eq.s32.totalorder %s26, 0
      %p163 = por %p161, %p162
      %p164 = scmp.le.s32.totalorder 1, %s20
      %p165 = scmp.lt.s32.totalorder %s20, 3
      %p166 = pnand %p164, %p165
      %p167 = pneg %p166
      // Predicated region
      $region9: #{tpu_custom_call.1} parent=5 // pred_check
        _
      $region10: #{tpu_custom_call.1} parent=5 // pred_check_branch
        %169 = sbr.rel (%p166) target = $region12
      $region11: #{tpu_custom_call.1} parent=5 // pred_region
        %s170 = ssub.s32 %s20, 1
        // Predicated region
        $region13: #{tpu_custom_call.1} parent=11 // pred_check
          %p171 = pneg %p67
        $region14: #{tpu_custom_call.1} parent=11 // pred_check_branch
          %173 = sbr.rel (%p171) target = $region16
        $region15: #{tpu_custom_call.1} parent=11 // pred_region
          %175 = vsyncadd [#allocation8], 0
          %s176 = sshll.u32 %s1, 4
          %s177 = int_to_ptr.hbm [resolvable:$true] %s176
          %s178 = sshll.u32 [#allocation7], 4
          %s179 = int_to_ptr.vmem [resolvable:$true] %s178
          %184 = dma.hbm_to_vmem [thread:$0]  %s177, 2048, %s179, [#allocation8], 128, 128, 8
        $region16: #{tpu_custom_call.1} parent=11 // pred_fallthru
          _
        // Predicated region
        $region17: #{tpu_custom_call.1} parent=11 // pred_check
          %p185 = pneg %p88
        $region18: #{tpu_custom_call.1} parent=11 // pred_check_branch
          %187 = sbr.rel (%p185) target = $region20
        $region19: #{tpu_custom_call.1} parent=11 // pred_region
          %189 = vsyncadd [#allocation8], 0
          %s191 = sshll.u32 %s2, 4
          %s192 = int_to_ptr.hbm [resolvable:$true] %s191
          %s193 = sshll.u32 [#allocation9], 4
          %s194 = int_to_ptr.vmem [resolvable:$true] %s193
          %196 = dma.hbm_to_vmem [thread:$0]  %s192, 32, %s194, [#allocation8]
        $region20: #{tpu_custom_call.1} parent=11 // pred_fallthru
          _
        // Predicated region
        $region21: #{tpu_custom_call.1} parent=11 // pred_check
          %p197 = pneg %p109
        $region22: #{tpu_custom_call.1} parent=11 // pred_check_branch
          %199 = sbr.rel (%p197) target = $region24
        $region23: #{tpu_custom_call.1} parent=11 // pred_region
          %201 = vsyncadd [#allocation5], 0
          %s203 = sshll.u32 %s3, 4
          %s204 = int_to_ptr.hbm [resolvable:$true] %s203
          %206 = dma.hbm_to_smem %s204, 128, [#allocation10], [#allocation5]
        $region24: #{tpu_custom_call.1} parent=11 // pred_fallthru
          _
        // Predicated region
        $region25: #{tpu_custom_call.1} parent=11 // pred_check
          %p207 = pneg %p130
        $region26: #{tpu_custom_call.1} parent=11 // pred_check_branch
          %209 = sbr.rel (%p207) target = $region28
        $region27: #{tpu_custom_call.1} parent=11 // pred_region
          %211 = vsyncadd [#allocation6], 0
          %s213 = sshll.u32 %s4, 4
          %s214 = int_to_ptr.vmem [resolvable:$true] %s213
          %216 = dma.vmem_to_smem %s214, 16, [#allocation11], [#allocation6]
        $region28: #{tpu_custom_call.1} parent=11 // pred_fallthru
          _
      $region12: #{tpu_custom_call.1} parent=5 // pred_fallthru
        _
      %p217 = scmp.lt.s32.totalorder %s20, 2
      // Predicated region
      $region29: #{tpu_custom_call.1} parent=5 // pred_check
        %p218 = pneg %p217
      $region30: #{tpu_custom_call.1} parent=5 // pred_check_branch
        %220 = sbr.rel (%p218) target = $region32
      $region31: #{tpu_custom_call.1} parent=5 // pred_region
        // Predicated region
        $region33: #{tpu_custom_call.1} parent=31 // pred_check
          %p221 = pneg %p40
        $region34: #{tpu_custom_call.1} parent=31 // pred_check_branch
          %223 = sbr.rel (%p221) target = $region36
        $region35: #{tpu_custom_call.1} parent=31 // pred_region
          %s224 = sand.u32 %s30, 1
          %s225 = scalar_lea.sflag [#allocation3], %s224
          %s226 = sand.u32 %s30, 1
          %s227 = smul.addr %s226, 128
          %s228 = scalar_lea.vmem [#allocation2], %s227
          %s229 = smul.u32 32, %s20
          %231 = vsyncadd %s225, 0
          %s232 = smul.addr %s229, 4
          %s233 = scalar_lea.hbm %s0, %s232
          %s234 = sshll.u32 %s233, 4
          %s235 = int_to_ptr.hbm [resolvable:$true] %s234
          %s236 = sshll.u32 %s228, 4
          %s237 = int_to_ptr.vmem [resolvable:$true] %s236
          %242 = dma.hbm_to_vmem [thread:$0]  %s235, 2048, %s237, %s225, 64, 64, 4
        $region36: #{tpu_custom_call.1} parent=31 // pred_fallthru
          _
      $region32: #{tpu_custom_call.1} parent=5 // pred_fallthru
        _
      %p243 = scmp.le.s32.totalorder 1, %s20
      %p244 = scmp.lt.s32.totalorder %s20, 3
      %p245 = pnand %p243, %p244
      %p246 = pneg %p245
      // Predicated region
      $region37: #{tpu_custom_call.1} parent=5 // pred_check
        _
      $region38: #{tpu_custom_call.1} parent=5 // pred_check_branch
        %248 = sbr.rel (%p245) target = $region40
      $region39: #{tpu_custom_call.1} parent=5 // pred_region
        %s249 = ssub.s32 %s20, 1
        %s250 = sand.u32 %s33, 1
        %s251 = scalar_lea.sflag [#allocation3], %s250
        %s252 = sand.u32 %s33, 1
        %s253 = smul.addr %s252, 128
        %s254 = scalar_lea.vmem [#allocation2], %s253
        // Predicated region
        $region41: #{tpu_custom_call.1} parent=39 // pred_check
          %p255 = pneg %p46
        $region42: #{tpu_custom_call.1} parent=39 // pred_check_branch
          %257 = sbr.rel (%p255) target = $region44
        $region43: #{tpu_custom_call.1} parent=39 // pred_region
          %259 = dma.done %s251, 2048
        $region44: #{tpu_custom_call.1} parent=39 // pred_fallthru
          _
        // Predicated region
        $region45: #{tpu_custom_call.1} parent=39 // pred_check
          %p260 = pneg %p67
        $region46: #{tpu_custom_call.1} parent=39 // pred_check_branch
          %262 = sbr.rel (%p260) target = $region48
        $region47: #{tpu_custom_call.1} parent=39 // pred_region
          %264 = dma.done [#allocation8], 2048
        $region48: #{tpu_custom_call.1} parent=39 // pred_fallthru
          _
        // Predicated region
        $region49: #{tpu_custom_call.1} parent=39 // pred_check
          %p265 = pneg %p88
        $region50: #{tpu_custom_call.1} parent=39 // pred_check_branch
          %267 = sbr.rel (%p265) target = $region52
        $region51: #{tpu_custom_call.1} parent=39 // pred_region
          %269 = dma.done [#allocation8], 32
        $region52: #{tpu_custom_call.1} parent=39 // pred_fallthru
          _
        // Predicated region
        $region53: #{tpu_custom_call.1} parent=39 // pred_check
          %p270 = pneg %p109
        $region54: #{tpu_custom_call.1} parent=39 // pred_check_branch
          %272 = sbr.rel (%p270) target = $region56
        $region55: #{tpu_custom_call.1} parent=39 // pred_region
          %274 = dma.done [#allocation5], 128
        $region56: #{tpu_custom_call.1} parent=39 // pred_fallthru
          _
        // Predicated region
        $region57: #{tpu_custom_call.1} parent=39 // pred_check
          %p275 = pneg %p130
        $region58: #{tpu_custom_call.1} parent=39 // pred_check_branch
          %277 = sbr.rel (%p275) target = $region60
        $region59: #{tpu_custom_call.1} parent=39 // pred_region
          %279 = dma.done [#allocation6], 16
        $region60: #{tpu_custom_call.1} parent=39 // pred_fallthru
          _
        %280 = sfence
        %s281 = sand.u32 %s33, 1
        %s282 = scalar_lea.sflag [#allocation3], %s281
        %s283 = sand.u32 %s33, 1
        %s284 = smul.addr %s283, 128
        %s285 = scalar_lea.vmem [#allocation2], %s284
        %p286 = pneg %p46
        %p287 = pneg %p43
        %p288 = pneg %p67
        %p289 = pneg %p64
        %p290 = pneg %p88
        %p291 = pneg %p85
        %p292 = pneg %p109
        %p293 = pneg %p106
        %p294 = pneg %p130
        %p295 = pneg %p127
        %p296 = pneg %p156
        %p297 = pneg %p153
        %s298 = sand.u32 %s143, 1
        %s299 = scalar_lea.sflag [#allocation4], %s298
        %s300 = sand.u32 %s143, 1
        %s301 = smul.addr %s300, 256
        %s302 = scalar_lea.vmem [#allocation12], %s301
        %s303 = smul.u32 32, %s25
        %s304 = smul.u32 32, %s25
        %v305 = vld [vmem:[%s254] sm:$0xf]
        %v306 = vld [vmem:[%s254 + $0x4] sm:$0xf]
        %v307 = vld [vmem:[%s254 + $0x8] sm:$0xf]
        %v308 = vld [vmem:[%s254 + $0xc] sm:$0xf]
        %v309 = vld [vmem:[%s254 + $0x10] sm:$0xf]
        %v310 = vld [vmem:[%s254 + $0x14] sm:$0xf]
        %v311 = vld [vmem:[%s254 + $0x18] sm:$0xf]
        %v312 = vld [vmem:[%s254 + $0x1c] sm:$0xf]
        %v313 = vld [vmem:[%s254 + $0x20] sm:$0xf]
        %v314 = vld [vmem:[%s254 + $0x24] sm:$0xf]
        %v315 = vld [vmem:[%s254 + $0x28] sm:$0xf]
        %v316 = vld [vmem:[%s254 + $0x2c] sm:$0xf]
        %v317 = vld [vmem:[%s254 + $0x30] sm:$0xf]
        %v318 = vld [vmem:[%s254 + $0x34] sm:$0xf]
        %v319 = vld [vmem:[%s254 + $0x38] sm:$0xf]
        %v320 = vld [vmem:[%s254 + $0x3c] sm:$0xf]
        %v321 = vld [vmem:[%s254 + $0x40] sm:$0xf]
        %v322 = vld [vmem:[%s254 + $0x44] sm:$0xf]
        %v323 = vld [vmem:[%s254 + $0x48] sm:$0xf]
        %v324 = vld [vmem:[%s254 + $0x4c] sm:$0xf]
        %v325 = vld [vmem:[%s254 + $0x50] sm:$0xf]
        %v326 = vld [vmem:[%s254 + $0x54] sm:$0xf]
        %v327 = vld [vmem:[%s254 + $0x58] sm:$0xf]
        %v328 = vld [vmem:[%s254 + $0x5c] sm:$0xf]
        %v329 = vld [vmem:[%s254 + $0x60] sm:$0xf]
        %v330 = vld [vmem:[%s254 + $0x64] sm:$0xf]
        %v331 = vld [vmem:[%s254 + $0x68] sm:$0xf]
        %v332 = vld [vmem:[%s254 + $0x6c] sm:$0xf]
        %v333 = vld [vmem:[%s254 + $0x70] sm:$0xf]
        %v334 = vld [vmem:[%s254 + $0x74] sm:$0xf]
        %v335 = vld [vmem:[%s254 + $0x78] sm:$0xf]
        %v336 = vld [vmem:[%s254 + $0x7c] sm:$0xf]
        %v337 = vld [vmem:[#allocation7] sm:$0xff]
        %v338 = vld [vmem:[#allocation7 + $0x8] sm:$0xff]
        %v339 = vld [vmem:[#allocation7 + $0x10] sm:$0xff]
        %v340 = vld [vmem:[#allocation7 + $0x18] sm:$0xff]
        %v341 = vld [vmem:[#allocation7 + $0x20] sm:$0xff]
        %v342 = vld [vmem:[#allocation7 + $0x28] sm:$0xff]
        %v343 = vld [vmem:[#allocation7 + $0x30] sm:$0xff]
        %v344 = vld [vmem:[#allocation7 + $0x38] sm:$0xff]
        %v345 = vld [vmem:[#allocation7 + $0x40] sm:$0xff]
        %v346 = vld [vmem:[#allocation7 + $0x48] sm:$0xff]
        %v347 = vld [vmem:[#allocation7 + $0x50] sm:$0xff]
        %v348 = vld [vmem:[#allocation7 + $0x58] sm:$0xff]
        %v349 = vld [vmem:[#allocation7 + $0x60] sm:$0xff]
        %v350 = vld [vmem:[#allocation7 + $0x68] sm:$0xff]
        %v351 = vld [vmem:[#allocation7 + $0x70] sm:$0xff]
        %v352 = vld [vmem:[#allocation7 + $0x78] sm:$0xff]
        %v353 = vld [vmem:[#allocation9] sm:$0x3]
        %v355 = vperm.slane %v353, 0
        %v356 = vperm.slane %v353, 1
        %v391 = vunpack.c.l.b16 %v305
        %v392 = vunpack.c.l.b16 %v306
        %v393 = vunpack.c.l.b16 %v307
        %v394 = vunpack.c.l.b16 %v308
        %v395 = vunpack.c.l.b16 %v309
        %v396 = vunpack.c.l.b16 %v310
        %v397 = vunpack.c.l.b16 %v311
        %v398 = vunpack.c.l.b16 %v312
        %v399 = vunpack.c.l.b16 %v313
        %v400 = vunpack.c.l.b16 %v314
        %v401 = vunpack.c.l.b16 %v315
        %v402 = vunpack.c.l.b16 %v316
        %v403 = vunpack.c.l.b16 %v317
        %v404 = vunpack.c.l.b16 %v318
        %v405 = vunpack.c.l.b16 %v319
        %v406 = vunpack.c.l.b16 %v320
        %v407 = vunpack.c.l.b16 %v321
        %v408 = vunpack.c.l.b16 %v322
        %v409 = vunpack.c.l.b16 %v323
        %v410 = vunpack.c.l.b16 %v324
        %v411 = vunpack.c.l.b16 %v325
        %v412 = vunpack.c.l.b16 %v326
        %v413 = vunpack.c.l.b16 %v327
        %v414 = vunpack.c.l.b16 %v328
        %v415 = vunpack.c.l.b16 %v329
        %v416 = vunpack.c.l.b16 %v330
        %v417 = vunpack.c.l.b16 %v331
        %v418 = vunpack.c.l.b16 %v332
        %v419 = vunpack.c.l.b16 %v333
        %v420 = vunpack.c.l.b16 %v334
        %v421 = vunpack.c.l.b16 %v335
        %v422 = vunpack.c.l.b16 %v336
        %v423 = vpack.c.b16 %v392, %v391
        %v424 = vpack.c.b16 %v394, %v393
        %v425 = vpack.c.b16 %v396, %v395
        %v426 = vpack.c.b16 %v398, %v397
        %v427 = vpack.c.b16 %v400, %v399
        %v428 = vpack.c.b16 %v402, %v401
        %v429 = vpack.c.b16 %v404, %v403
        %v430 = vpack.c.b16 %v406, %v405
        %v431 = vpack.c.b16 %v408, %v407
        %v432 = vpack.c.b16 %v410, %v409
        %v433 = vpack.c.b16 %v412, %v411
        %v434 = vpack.c.b16 %v414, %v413
        %v435 = vpack.c.b16 %v416, %v415
        %v436 = vpack.c.b16 %v418, %v417
        %v437 = vpack.c.b16 %v420, %v419
        %v438 = vpack.c.b16 %v422, %v421
        %v471 = vunpack.c.l.b16 %v337
        %v472 = vunpack.c.h.b16 %v337
        %v473 = vunpack.c.l.b16 %v338
        %v474 = vunpack.c.h.b16 %v338
        %v475 = vunpack.c.l.b16 %v339
        %v476 = vunpack.c.h.b16 %v339
        %v477 = vunpack.c.l.b16 %v340
        %v478 = vunpack.c.h.b16 %v340
        %v479 = vunpack.c.l.b16 %v341
        %v480 = vunpack.c.h.b16 %v341
        %v481 = vunpack.c.l.b16 %v342
        %v482 = vunpack.c.h.b16 %v342
        %v483 = vunpack.c.l.b16 %v343
        %v484 = vunpack.c.h.b16 %v343
        %v485 = vunpack.c.l.b16 %v344
        %v486 = vunpack.c.h.b16 %v344
        %v487 = vunpack.c.l.b16 %v345
        %v488 = vunpack.c.h.b16 %v345
        %v489 = vunpack.c.l.b16 %v346
        %v490 = vunpack.c.h.b16 %v346
        %v491 = vunpack.c.l.b16 %v347
        %v492 = vunpack.c.h.b16 %v347
        %v493 = vunpack.c.l.b16 %v348
        %v494 = vunpack.c.h.b16 %v348
        %v495 = vunpack.c.l.b16 %v349
        %v496 = vunpack.c.h.b16 %v349
        %v497 = vunpack.c.l.b16 %v350
        %v498 = vunpack.c.h.b16 %v350
        %v499 = vunpack.c.l.b16 %v351
        %v500 = vunpack.c.h.b16 %v351
        %v501 = vunpack.c.l.b16 %v352
        %v502 = vunpack.c.h.b16 %v352
        %v503 = vpack.c.b16 %v473, %v471
        %v504 = vpack.c.b16 %v474, %v472
        %v505 = vpack.c.b16 %v477, %v475
        %v506 = vpack.c.b16 %v478, %v476
        %v507 = vpack.c.b16 %v481, %v479
        %v508 = vpack.c.b16 %v482, %v480
        %v509 = vpack.c.b16 %v485, %v483
        %v510 = vpack.c.b16 %v486, %v484
        %v511 = vpack.c.b16 %v489, %v487
        %v512 = vpack.c.b16 %v490, %v488
        %v513 = vpack.c.b16 %v493, %v491
        %v514 = vpack.c.b16 %v494, %v492
        %v515 = vpack.c.b16 %v497, %v495
        %v516 = vpack.c.b16 %v498, %v496
        %v517 = vpack.c.b16 %v501, %v499
        %v518 = vpack.c.b16 %v502, %v500
        %535 = vmatpush.bf16.msra.mxu0 %v517
        %536 = vmatpush.bf16.msra.mxu0 %v515
        %537 = vmatpush.bf16.msra.mxu0 %v513
        %538 = vmatpush.bf16.msra.mxu0 %v511
        %539 = vmatpush.bf16.msra.mxu0 %v509
        %540 = vmatpush.bf16.msra.mxu0 %v507
        %541 = vmatpush.bf16.msra.mxu0 %v505
        %542 = vmatpush.bf16.msra.mxu0 %v503
        %543 = vmatmul.bf16.gmra.mxu0 %v423
        %v544 = vpop.f32.mrf.mxu0
        %v545 = vadd.f32 %v355, %v544
        %v546 = vpop.f32.mrf.mxu0
        %v547 = vadd.f32 %v355, %v546
        %548 = vmatmul.bf16.gmra.mxu0 %v424
        %v549 = vpop.f32.mrf.mxu0
        %v550 = vadd.f32 %v355, %v549
        %v551 = vpop.f32.mrf.mxu0
        %v552 = vadd.f32 %v355, %v551
        %553 = vmatmul.bf16.gmra.mxu0 %v425
        %v554 = vpop.f32.mrf.mxu0
        %v555 = vadd.f32 %v355, %v554
        %v556 = vpop.f32.mrf.mxu0
        %v557 = vadd.f32 %v355, %v556
        %558 = vmatmul.bf16.gmra.mxu0 %v426
        %v559 = vpop.f32.mrf.mxu0
        %v560 = vadd.f32 %v355, %v559
        %v561 = vpop.f32.mrf.mxu0
        %v562 = vadd.f32 %v355, %v561
        %563 = vmatmul.bf16.gmra.mxu0 %v427
        %v564 = vpop.f32.mrf.mxu0
        %v565 = vadd.f32 %v355, %v564
        %v566 = vpop.f32.mrf.mxu0
        %v567 = vadd.f32 %v355, %v566
        %568 = vmatmul.bf16.gmra.mxu0 %v428
        %v569 = vpop.f32.mrf.mxu0
        %v570 = vadd.f32 %v355, %v569
        %v571 = vpop.f32.mrf.mxu0
        %v572 = vadd.f32 %v355, %v571
        %573 = vmatmul.bf16.gmra.mxu0 %v429
        %v574 = vpop.f32.mrf.mxu0
        %v575 = vadd.f32 %v355, %v574
        %v576 = vpop.f32.mrf.mxu0
        %v577 = vadd.f32 %v355, %v576
        %578 = vmatmul.bf16.gmra.mxu0 %v430
        %v579 = vpop.f32.mrf.mxu0
        %v580 = vadd.f32 %v355, %v579
        %v581 = vpop.f32.mrf.mxu0
        %v582 = vadd.f32 %v355, %v581
        %583 = vmatmul.bf16.gmra.mxu0 %v431
        %v584 = vpop.f32.mrf.mxu0
        %v585 = vadd.f32 %v355, %v584
        %v586 = vpop.f32.mrf.mxu0
        %v587 = vadd.f32 %v355, %v586
        %588 = vmatmul.bf16.gmra.mxu0 %v432
        %v589 = vpop.f32.mrf.mxu0
        %v590 = vadd.f32 %v355, %v589
        %v591 = vpop.f32.mrf.mxu0
        %v592 = vadd.f32 %v355, %v591
        %593 = vmatmul.bf16.gmra.mxu0 %v433
        %v594 = vpop.f32.mrf.mxu0
        %v595 = vadd.f32 %v355, %v594
        %v596 = vpop.f32.mrf.mxu0
        %v597 = vadd.f32 %v355, %v596
        %598 = vmatmul.bf16.gmra.mxu0 %v434
        %v599 = vpop.f32.mrf.mxu0
        %v600 = vadd.f32 %v355, %v599
        %v601 = vpop.f32.mrf.mxu0
        %v602 = vadd.f32 %v355, %v601
        %603 = vmatmul.bf16.gmra.mxu0 %v435
        %v604 = vpop.f32.mrf.mxu0
        %v605 = vadd.f32 %v355, %v604
        %v606 = vpop.f32.mrf.mxu0
        %v607 = vadd.f32 %v355, %v606
        %608 = vmatmul.bf16.gmra.mxu0 %v436
        %v609 = vpop.f32.mrf.mxu0
        %v610 = vadd.f32 %v355, %v609
        %v611 = vpop.f32.mrf.mxu0
        %v612 = vadd.f32 %v355, %v611
        %613 = vmatmul.bf16.gmra.mxu0 %v437
        %v614 = vpop.f32.mrf.mxu0
        %v615 = vadd.f32 %v355, %v614
        %v616 = vpop.f32.mrf.mxu0
        %v617 = vadd.f32 %v355, %v616
        %618 = vmatmul.bf16.gmra.mxu0 %v438
        %v619 = vpop.f32.mrf.mxu0
        %v620 = vadd.f32 %v355, %v619
        %v621 = vpop.f32.mrf.mxu0
        %v622 = vadd.f32 %v355, %v621
        %623 = vdwg.mxu0
        %624 = vmatpush.bf16.msra.mxu0 %v518
        %625 = vmatpush.bf16.msra.mxu0 %v516
        %626 = vmatpush.bf16.msra.mxu0 %v514
        %627 = vmatpush.bf16.msra.mxu0 %v512
        %628 = vmatpush.bf16.msra.mxu0 %v510
        %629 = vmatpush.bf16.msra.mxu0 %v508
        %630 = vmatpush.bf16.msra.mxu0 %v506
        %631 = vmatpush.bf16.msra.mxu0 %v504
        %632 = vmatmul.bf16.gmra.mxu0 %v423
        %v633 = vpop.f32.mrf.mxu0
        %v634 = vadd.f32 %v356, %v633
        %v635 = vpop.f32.mrf.mxu0
        %v636 = vadd.f32 %v356, %v635
        %637 = vmatmul.bf16.gmra.mxu0 %v424
        %v638 = vpop.f32.mrf.mxu0
        %v639 = vadd.f32 %v356, %v638
        %v640 = vpop.f32.mrf.mxu0
        %v641 = vadd.f32 %v356, %v640
        %642 = vmatmul.bf16.gmra.mxu0 %v425
        %v643 = vpop.f32.mrf.mxu0
        %v644 = vadd.f32 %v356, %v643
        %v645 = vpop.f32.mrf.mxu0
        %v646 = vadd.f32 %v356, %v645
        %647 = vmatmul.bf16.gmra.mxu0 %v426
        %v648 = vpop.f32.mrf.mxu0
        %v649 = vadd.f32 %v356, %v648
        %v650 = vpop.f32.mrf.mxu0
        %v651 = vadd.f32 %v356, %v650
        %652 = vmatmul.bf16.gmra.mxu0 %v427
        %v653 = vpop.f32.mrf.mxu0
        %v654 = vadd.f32 %v356, %v653
        %v655 = vpop.f32.mrf.mxu0
        %v656 = vadd.f32 %v356, %v655
        %657 = vmatmul.bf16.gmra.mxu0 %v428
        %v658 = vpop.f32.mrf.mxu0
        %v659 = vadd.f32 %v356, %v658
        %v660 = vpop.f32.mrf.mxu0
        %v661 = vadd.f32 %v356, %v660
        %662 = vmatmul.bf16.gmra.mxu0 %v429
        %v663 = vpop.f32.mrf.mxu0
        %v664 = vadd.f32 %v356, %v663
        %v665 = vpop.f32.mrf.mxu0
        %v666 = vadd.f32 %v356, %v665
        %667 = vmatmul.bf16.gmra.mxu0 %v430
        %v668 = vpop.f32.mrf.mxu0
        %v669 = vadd.f32 %v356, %v668
        %v670 = vpop.f32.mrf.mxu0
        %v671 = vadd.f32 %v356, %v670
        %672 = vmatmul.bf16.gmra.mxu0 %v431
        %v673 = vpop.f32.mrf.mxu0
        %v674 = vadd.f32 %v356, %v673
        %v675 = vpop.f32.mrf.mxu0
        %v676 = vadd.f32 %v356, %v675
        %677 = vmatmul.bf16.gmra.mxu0 %v432
        %v678 = vpop.f32.mrf.mxu0
        %v679 = vadd.f32 %v356, %v678
        %v680 = vpop.f32.mrf.mxu0
        %v681 = vadd.f32 %v356, %v680
        %682 = vmatmul.bf16.gmra.mxu0 %v433
        %v683 = vpop.f32.mrf.mxu0
        %v684 = vadd.f32 %v356, %v683
        %v685 = vpop.f32.mrf.mxu0
        %v686 = vadd.f32 %v356, %v685
        %687 = vmatmul.bf16.gmra.mxu0 %v434
        %v688 = vpop.f32.mrf.mxu0
        %v689 = vadd.f32 %v356, %v688
        %v690 = vpop.f32.mrf.mxu0
        %v691 = vadd.f32 %v356, %v690
        %692 = vmatmul.bf16.gmra.mxu0 %v435
        %v693 = vpop.f32.mrf.mxu0
        %v694 = vadd.f32 %v356, %v693
        %v695 = vpop.f32.mrf.mxu0
        %v696 = vadd.f32 %v356, %v695
        %697 = vmatmul.bf16.gmra.mxu0 %v436
        %v698 = vpop.f32.mrf.mxu0
        %v699 = vadd.f32 %v356, %v698
        %v700 = vpop.f32.mrf.mxu0
        %v701 = vadd.f32 %v356, %v700
        %702 = vmatmul.bf16.gmra.mxu0 %v437
        %v703 = vpop.f32.mrf.mxu0
        %v704 = vadd.f32 %v356, %v703
        %v705 = vpop.f32.mrf.mxu0
        %v706 = vadd.f32 %v356, %v705
        %707 = vmatmul.bf16.gmra.mxu0 %v438
        %v708 = vpop.f32.mrf.mxu0
        %v709 = vadd.f32 %v356, %v708
        %v710 = vpop.f32.mrf.mxu0
        %v711 = vadd.f32 %v356, %v710
        %712 = vdwg.mxu0
        %vm713 = vcmp.gt.f32.partialorder %v545, 0.0
        %vm714 = vcmp.gt.f32.partialorder %v634, 0.0
        %vm715 = vcmp.gt.f32.partialorder %v547, 0.0
        %vm716 = vcmp.gt.f32.partialorder %v636, 0.0
        %vm717 = vcmp.gt.f32.partialorder %v550, 0.0
        %vm718 = vcmp.gt.f32.partialorder %v639, 0.0
        %vm719 = vcmp.gt.f32.partialorder %v552, 0.0
        %vm720 = vcmp.gt.f32.partialorder %v641, 0.0
        %vm721 = vcmp.gt.f32.partialorder %v555, 0.0
        %vm722 = vcmp.gt.f32.partialorder %v644, 0.0
        %vm723 = vcmp.gt.f32.partialorder %v557, 0.0
        %vm724 = vcmp.gt.f32.partialorder %v646, 0.0
        %vm725 = vcmp.gt.f32.partialorder %v560, 0.0
        %vm726 = vcmp.gt.f32.partialorder %v649, 0.0
        %vm727 = vcmp.gt.f32.partialorder %v562, 0.0
        %vm728 = vcmp.gt.f32.partialorder %v651, 0.0
        %vm729 = vcmp.gt.f32.partialorder %v565, 0.0
        %vm730 = vcmp.gt.f32.partialorder %v654, 0.0
        %vm731 = vcmp.gt.f32.partialorder %v567, 0.0
        %vm732 = vcmp.gt.f32.partialorder %v656, 0.0
        %vm733 = vcmp.gt.f32.partialorder %v570, 0.0
        %vm734 = vcmp.gt.f32.partialorder %v659, 0.0
        %vm735 = vcmp.gt.f32.partialorder %v572, 0.0
        %vm736 = vcmp.gt.f32.partialorder %v661, 0.0
        %vm737 = vcmp.gt.f32.partialorder %v575, 0.0
        %vm738 = vcmp.gt.f32.partialorder %v664, 0.0
        %vm739 = vcmp.gt.f32.partialorder %v577, 0.0
        %vm740 = vcmp.gt.f32.partialorder %v666, 0.0
        %vm741 = vcmp.gt.f32.partialorder %v580, 0.0
        %vm742 = vcmp.gt.f32.partialorder %v669, 0.0
        %vm743 = vcmp.gt.f32.partialorder %v582, 0.0
        %vm744 = vcmp.gt.f32.partialorder %v671, 0.0
        %vm745 = vcmp.gt.f32.partialorder %v585, 0.0
        %vm746 = vcmp.gt.f32.partialorder %v674, 0.0
        %vm747 = vcmp.gt.f32.partialorder %v587, 0.0
        %vm748 = vcmp.gt.f32.partialorder %v676, 0.0
        %vm749 = vcmp.gt.f32.partialorder %v590, 0.0
        %vm750 = vcmp.gt.f32.partialorder %v679, 0.0
        %vm751 = vcmp.gt.f32.partialorder %v592, 0.0
        %vm752 = vcmp.gt.f32.partialorder %v681, 0.0
        %vm753 = vcmp.gt.f32.partialorder %v595, 0.0
        %vm754 = vcmp.gt.f32.partialorder %v684, 0.0
        %vm755 = vcmp.gt.f32.partialorder %v597, 0.0
        %vm756 = vcmp.gt.f32.partialorder %v686, 0.0
        %vm757 = vcmp.gt.f32.partialorder %v600, 0.0
        %vm758 = vcmp.gt.f32.partialorder %v689, 0.0
        %vm759 = vcmp.gt.f32.partialorder %v602, 0.0
        %vm760 = vcmp.gt.f32.partialorder %v691, 0.0
        %vm761 = vcmp.gt.f32.partialorder %v605, 0.0
        %vm762 = vcmp.gt.f32.partialorder %v694, 0.0
        %vm763 = vcmp.gt.f32.partialorder %v607, 0.0
        %vm764 = vcmp.gt.f32.partialorder %v696, 0.0
        %vm765 = vcmp.gt.f32.partialorder %v610, 0.0
        %vm766 = vcmp.gt.f32.partialorder %v699, 0.0
        %vm767 = vcmp.gt.f32.partialorder %v612, 0.0
        %vm768 = vcmp.gt.f32.partialorder %v701, 0.0
        %vm769 = vcmp.gt.f32.partialorder %v615, 0.0
        %vm770 = vcmp.gt.f32.partialorder %v704, 0.0
        %vm771 = vcmp.gt.f32.partialorder %v617, 0.0
        %vm772 = vcmp.gt.f32.partialorder %v706, 0.0
        %vm773 = vcmp.gt.f32.partialorder %v620, 0.0
        %vm774 = vcmp.gt.f32.partialorder %v709, 0.0
        %vm775 = vcmp.gt.f32.partialorder %v622, 0.0
        %vm776 = vcmp.gt.f32.partialorder %v711, 0.0
        %v777 = vmul.f32 %v545, 1.442695
        %v778 = vpow.pop %v777
        %v779 = vmul.f32 %v634, 1.442695
        %v780 = vpow.pop %v779
        %v781 = vmul.f32 %v547, 1.442695
        %v782 = vpow.pop %v781
        %v783 = vmul.f32 %v636, 1.442695
        %v784 = vpow.pop %v783
        %v785 = vmul.f32 %v550, 1.442695
        %v786 = vpow.pop %v785
        %v787 = vmul.f32 %v639, 1.442695
        %v788 = vpow.pop %v787
        %v789 = vmul.f32 %v552, 1.442695
        %v790 = vpow.pop %v789
        %v791 = vmul.f32 %v641, 1.442695
        %v792 = vpow.pop %v791
        %v793 = vmul.f32 %v555, 1.442695
        %v794 = vpow.pop %v793
        %v795 = vmul.f32 %v644, 1.442695
        %v796 = vpow.pop %v795
        %v797 = vmul.f32 %v557, 1.442695
        %v798 = vpow.pop %v797
        %v799 = vmul.f32 %v646, 1.442695
        %v800 = vpow.pop %v799
        %v801 = vmul.f32 %v560, 1.442695
        %v802 = vpow.pop %v801
        %v803 = vmul.f32 %v649, 1.442695
        %v804 = vpow.pop %v803
        %v805 = vmul.f32 %v562, 1.442695
        %v806 = vpow.pop %v805
        %v807 = vmul.f32 %v651, 1.442695
        %v808 = vpow.pop %v807
        %v809 = vmul.f32 %v565, 1.442695
        %v810 = vpow.pop %v809
        %v811 = vmul.f32 %v654, 1.442695
        %v812 = vpow.pop %v811
        %v813 = vmul.f32 %v567, 1.442695
        %v814 = vpow.pop %v813
        %v815 = vmul.f32 %v656, 1.442695
        %v816 = vpow.pop %v815
        %v817 = vmul.f32 %v570, 1.442695
        %v818 = vpow.pop %v817
        %v819 = vmul.f32 %v659, 1.442695
        %v820 = vpow.pop %v819
        %v821 = vmul.f32 %v572, 1.442695
        %v822 = vpow.pop %v821
        %v823 = vmul.f32 %v661, 1.442695
        %v824 = vpow.pop %v823
        %v825 = vmul.f32 %v575, 1.442695
        %v826 = vpow.pop %v825
        %v827 = vmul.f32 %v664, 1.442695
        %v828 = vpow.pop %v827
        %v829 = vmul.f32 %v577, 1.442695
        %v830 = vpow.pop %v829
        %v831 = vmul.f32 %v666, 1.442695
        %v832 = vpow.pop %v831
        %v833 = vmul.f32 %v580, 1.442695
        %v834 = vpow.pop %v833
        %v835 = vmul.f32 %v669, 1.442695
        %v836 = vpow.pop %v835
        %v837 = vmul.f32 %v582, 1.442695
        %v838 = vpow.pop %v837
        %v839 = vmul.f32 %v671, 1.442695
        %v840 = vpow.pop %v839
        %v841 = vmul.f32 %v585, 1.442695
        %v842 = vpow.pop %v841
        %v843 = vmul.f32 %v674, 1.442695
        %v844 = vpow.pop %v843
        %v845 = vmul.f32 %v587, 1.442695
        %v846 = vpow.pop %v845
        %v847 = vmul.f32 %v676, 1.442695
        %v848 = vpow.pop %v847
        %v849 = vmul.f32 %v590, 1.442695
        %v850 = vpow.pop %v849
        %v851 = vmul.f32 %v679, 1.442695
        %v852 = vpow.pop %v851
        %v853 = vmul.f32 %v592, 1.442695
        %v854 = vpow.pop %v853
        %v855 = vmul.f32 %v681, 1.442695
        %v856 = vpow.pop %v855
        %v857 = vmul.f32 %v595, 1.442695
        %v858 = vpow.pop %v857
        %v859 = vmul.f32 %v684, 1.442695
        %v860 = vpow.pop %v859
        %v861 = vmul.f32 %v597, 1.442695
        %v862 = vpow.pop %v861
        %v863 = vmul.f32 %v686, 1.442695
        %v864 = vpow.pop %v863
        %v865 = vmul.f32 %v600, 1.442695
        %v866 = vpow.pop %v865
        %v867 = vmul.f32 %v689, 1.442695
        %v868 = vpow.pop %v867
        %v869 = vmul.f32 %v602, 1.442695
        %v870 = vpow.pop %v869
        %v871 = vmul.f32 %v691, 1.442695
        %v872 = vpow.pop %v871
        %v873 = vmul.f32 %v605, 1.442695
        %v874 = vpow.pop %v873
        %v875 = vmul.f32 %v694, 1.442695
        %v876 = vpow.pop %v875
        %v877 = vmul.f32 %v607, 1.442695
        %v878 = vpow.pop %v877
        %v879 = vmul.f32 %v696, 1.442695
        %v880 = vpow.pop %v879
        %v881 = vmul.f32 %v610, 1.442695
        %v882 = vpow.pop %v881
        %v883 = vmul.f32 %v699, 1.442695
        %v884 = vpow.pop %v883
        %v885 = vmul.f32 %v612, 1.442695
        %v886 = vpow.pop %v885
        %v887 = vmul.f32 %v701, 1.442695
        %v888 = vpow.pop %v887
        %v889 = vmul.f32 %v615, 1.442695
        %v890 = vpow.pop %v889
        %v891 = vmul.f32 %v704, 1.442695
        %v892 = vpow.pop %v891
        %v893 = vmul.f32 %v617, 1.442695
        %v894 = vpow.pop %v893
        %v895 = vmul.f32 %v706, 1.442695
        %v896 = vpow.pop %v895
        %v897 = vmul.f32 %v620, 1.442695
        %v898 = vpow.pop %v897
        %v899 = vmul.f32 %v709, 1.442695
        %v900 = vpow.pop %v899
        %v901 = vmul.f32 %v622, 1.442695
        %v902 = vpow.pop %v901
        %v903 = vmul.f32 %v711, 1.442695
        %v904 = vpow.pop %v903
        %v905 = vsub.f32 %v778, 1.0
        %v906 = vsub.f32 %v780, 1.0
        %v907 = vsub.f32 %v782, 1.0
        %v908 = vsub.f32 %v784, 1.0
        %v909 = vsub.f32 %v786, 1.0
        %v910 = vsub.f32 %v788, 1.0
        %v911 = vsub.f32 %v790, 1.0
        %v912 = vsub.f32 %v792, 1.0
        %v913 = vsub.f32 %v794, 1.0
        %v914 = vsub.f32 %v796, 1.0
        %v915 = vsub.f32 %v798, 1.0
        %v916 = vsub.f32 %v800, 1.0
        %v917 = vsub.f32 %v802, 1.0
        %v918 = vsub.f32 %v804, 1.0
        %v919 = vsub.f32 %v806, 1.0
        %v920 = vsub.f32 %v808, 1.0
        %v921 = vsub.f32 %v810, 1.0
        %v922 = vsub.f32 %v812, 1.0
        %v923 = vsub.f32 %v814, 1.0
        %v924 = vsub.f32 %v816, 1.0
        %v925 = vsub.f32 %v818, 1.0
        %v926 = vsub.f32 %v820, 1.0
        %v927 = vsub.f32 %v822, 1.0
        %v928 = vsub.f32 %v824, 1.0
        %v929 = vsub.f32 %v826, 1.0
        %v930 = vsub.f32 %v828, 1.0
        %v931 = vsub.f32 %v830, 1.0
        %v932 = vsub.f32 %v832, 1.0
        %v933 = vsub.f32 %v834, 1.0
        %v934 = vsub.f32 %v836, 1.0
        %v935 = vsub.f32 %v838, 1.0
        %v936 = vsub.f32 %v840, 1.0
        %v937 = vsub.f32 %v842, 1.0
        %v938 = vsub.f32 %v844, 1.0
        %v939 = vsub.f32 %v846, 1.0
        %v940 = vsub.f32 %v848, 1.0
        %v941 = vsub.f32 %v850, 1.0
        %v942 = vsub.f32 %v852, 1.0
        %v943 = vsub.f32 %v854, 1.0
        %v944 = vsub.f32 %v856, 1.0
        %v945 = vsub.f32 %v858, 1.0
        %v946 = vsub.f32 %v860, 1.0
        %v947 = vsub.f32 %v862, 1.0
        %v948 = vsub.f32 %v864, 1.0
        %v949 = vsub.f32 %v866, 1.0
        %v950 = vsub.f32 %v868, 1.0
        %v951 = vsub.f32 %v870, 1.0
        %v952 = vsub.f32 %v872, 1.0
        %v953 = vsub.f32 %v874, 1.0
        %v954 = vsub.f32 %v876, 1.0
        %v955 = vsub.f32 %v878, 1.0
        %v956 = vsub.f32 %v880, 1.0
        %v957 = vsub.f32 %v882, 1.0
        %v958 = vsub.f32 %v884, 1.0
        %v959 = vsub.f32 %v886, 1.0
        %v960 = vsub.f32 %v888, 1.0
        %v961 = vsub.f32 %v890, 1.0
        %v962 = vsub.f32 %v892, 1.0
        %v963 = vsub.f32 %v894, 1.0
        %v964 = vsub.f32 %v896, 1.0
        %v965 = vsub.f32 %v898, 1.0
        %v966 = vsub.f32 %v900, 1.0
        %v967 = vsub.f32 %v902, 1.0
        %v968 = vsub.f32 %v904, 1.0
        %v969 = vsel %vm713, %v545, %v905
        %v970 = vsel %vm714, %v634, %v906
        %v971 = vsel %vm715, %v547, %v907
        %v972 = vsel %vm716, %v636, %v908
        %v973 = vsel %vm717, %v550, %v909
        %v974 = vsel %vm718, %v639, %v910
        %v975 = vsel %vm719, %v552, %v911
        %v976 = vsel %vm720, %v641, %v912
        %v977 = vsel %vm721, %v555, %v913
        %v978 = vsel %vm722, %v644, %v914
        %v979 = vsel %vm723, %v557, %v915
        %v980 = vsel %vm724, %v646, %v916
        %v981 = vsel %vm725, %v560, %v917
        %v982 = vsel %vm726, %v649, %v918
        %v983 = vsel %vm727, %v562, %v919
        %v984 = vsel %vm728, %v651, %v920
        %v985 = vsel %vm729, %v565, %v921
        %v986 = vsel %vm730, %v654, %v922
        %v987 = vsel %vm731, %v567, %v923
        %v988 = vsel %vm732, %v656, %v924
        %v989 = vsel %vm733, %v570, %v925
        %v990 = vsel %vm734, %v659, %v926
        %v991 = vsel %vm735, %v572, %v927
        %v992 = vsel %vm736, %v661, %v928
        %v993 = vsel %vm737, %v575, %v929
        %v994 = vsel %vm738, %v664, %v930
        %v995 = vsel %vm739, %v577, %v931
        %v996 = vsel %vm740, %v666, %v932
        %v997 = vsel %vm741, %v580, %v933
        %v998 = vsel %vm742, %v669, %v934
        %v999 = vsel %vm743, %v582, %v935
        %v1000 = vsel %vm744, %v671, %v936
        %v1001 = vsel %vm745, %v585, %v937
        %v1002 = vsel %vm746, %v674, %v938
        %v1003 = vsel %vm747, %v587, %v939
        %v1004 = vsel %vm748, %v676, %v940
        %v1005 = vsel %vm749, %v590, %v941
        %v1006 = vsel %vm750, %v679, %v942
        %v1007 = vsel %vm751, %v592, %v943
        %v1008 = vsel %vm752, %v681, %v944
        %v1009 = vsel %vm753, %v595, %v945
        %v1010 = vsel %vm754, %v684, %v946
        %v1011 = vsel %vm755, %v597, %v947
        %v1012 = vsel %vm756, %v686, %v948
        %v1013 = vsel %vm757, %v600, %v949
        %v1014 = vsel %vm758, %v689, %v950
        %v1015 = vsel %vm759, %v602, %v951
        %v1016 = vsel %vm760, %v691, %v952
        %v1017 = vsel %vm761, %v605, %v953
        %v1018 = vsel %vm762, %v694, %v954
        %v1019 = vsel %vm763, %v607, %v955
        %v1020 = vsel %vm764, %v696, %v956
        %v1021 = vsel %vm765, %v610, %v957
        %v1022 = vsel %vm766, %v699, %v958
        %v1023 = vsel %vm767, %v612, %v959
        %v1024 = vsel %vm768, %v701, %v960
        %v1025 = vsel %vm769, %v615, %v961
        %v1026 = vsel %vm770, %v704, %v962
        %v1027 = vsel %vm771, %v617, %v963
        %v1028 = vsel %vm772, %v706, %v964
        %v1029 = vsel %vm773, %v620, %v965
        %v1030 = vsel %vm774, %v709, %v966
        %v1031 = vsel %vm775, %v622, %v967
        %v1032 = vsel %vm776, %v711, %v968
        %v1033 = vadd.f32 %v969, %v970
        %v1034 = vadd.f32 %v971, %v972
        %v1035 = vadd.f32 %v973, %v974
        %v1036 = vadd.f32 %v975, %v976
        %v1037 = vadd.f32 %v977, %v978
        %v1038 = vadd.f32 %v979, %v980
        %v1039 = vadd.f32 %v981, %v982
        %v1040 = vadd.f32 %v983, %v984
        %v1041 = vadd.f32 %v985, %v986
        %v1042 = vadd.f32 %v987, %v988
        %v1043 = vadd.f32 %v989, %v990
        %v1044 = vadd.f32 %v991, %v992
        %v1045 = vadd.f32 %v993, %v994
        %v1046 = vadd.f32 %v995, %v996
        %v1047 = vadd.f32 %v997, %v998
        %v1048 = vadd.f32 %v999, %v1000
        %v1049 = vadd.f32 %v1001, %v1002
        %v1050 = vadd.f32 %v1003, %v1004
        %v1051 = vadd.f32 %v1005, %v1006
        %v1052 = vadd.f32 %v1007, %v1008
        %v1053 = vadd.f32 %v1009, %v1010
        %v1054 = vadd.f32 %v1011, %v1012
        %v1055 = vadd.f32 %v1013, %v1014
        %v1056 = vadd.f32 %v1015, %v1016
        %v1057 = vadd.f32 %v1017, %v1018
        %v1058 = vadd.f32 %v1019, %v1020
        %v1059 = vadd.f32 %v1021, %v1022
        %v1060 = vadd.f32 %v1023, %v1024
        %v1061 = vadd.f32 %v1025, %v1026
        %v1062 = vadd.f32 %v1027, %v1028
        %v1063 = vadd.f32 %v1029, %v1030
        %v1064 = vadd.f32 %v1031, %v1032
        %vm1065 = vcmp.gt.f32.partialorder %v1033, 0.0
        %vm1066 = vcmp.gt.f32.partialorder %v1034, 0.0
        %vm1067 = vcmp.gt.f32.partialorder %v1035, 0.0
        %vm1068 = vcmp.gt.f32.partialorder %v1036, 0.0
        %vm1069 = vcmp.gt.f32.partialorder %v1037, 0.0
        %vm1070 = vcmp.gt.f32.partialorder %v1038, 0.0
        %vm1071 = vcmp.gt.f32.partialorder %v1039, 0.0
        %vm1072 = vcmp.gt.f32.partialorder %v1040, 0.0
        %vm1073 = vcmp.gt.f32.partialorder %v1041, 0.0
        %vm1074 = vcmp.gt.f32.partialorder %v1042, 0.0
        %vm1075 = vcmp.gt.f32.partialorder %v1043, 0.0
        %vm1076 = vcmp.gt.f32.partialorder %v1044, 0.0
        %vm1077 = vcmp.gt.f32.partialorder %v1045, 0.0
        %vm1078 = vcmp.gt.f32.partialorder %v1046, 0.0
        %vm1079 = vcmp.gt.f32.partialorder %v1047, 0.0
        %vm1080 = vcmp.gt.f32.partialorder %v1048, 0.0
        %vm1081 = vcmp.gt.f32.partialorder %v1049, 0.0
        %vm1082 = vcmp.gt.f32.partialorder %v1050, 0.0
        %vm1083 = vcmp.gt.f32.partialorder %v1051, 0.0
        %vm1084 = vcmp.gt.f32.partialorder %v1052, 0.0
        %vm1085 = vcmp.gt.f32.partialorder %v1053, 0.0
        %vm1086 = vcmp.gt.f32.partialorder %v1054, 0.0
        %vm1087 = vcmp.gt.f32.partialorder %v1055, 0.0
        %vm1088 = vcmp.gt.f32.partialorder %v1056, 0.0
        %vm1089 = vcmp.gt.f32.partialorder %v1057, 0.0
        %vm1090 = vcmp.gt.f32.partialorder %v1058, 0.0
        %vm1091 = vcmp.gt.f32.partialorder %v1059, 0.0
        %vm1092 = vcmp.gt.f32.partialorder %v1060, 0.0
        %vm1093 = vcmp.gt.f32.partialorder %v1061, 0.0
        %vm1094 = vcmp.gt.f32.partialorder %v1062, 0.0
        %vm1095 = vcmp.gt.f32.partialorder %v1063, 0.0
        %vm1096 = vcmp.gt.f32.partialorder %v1064, 0.0
        %v1097 = vmul.f32 %v1033, 1.442695
        %v1098 = vpow.pop %v1097
        %v1099 = vmul.f32 %v1034, 1.442695
        %v1100 = vpow.pop %v1099
        %v1101 = vmul.f32 %v1035, 1.442695
        %v1102 = vpow.pop %v1101
        %v1103 = vmul.f32 %v1036, 1.442695
        %v1104 = vpow.pop %v1103
        %v1105 = vmul.f32 %v1037, 1.442695
        %v1106 = vpow.pop %v1105
        %v1107 = vmul.f32 %v1038, 1.442695
        %v1108 = vpow.pop %v1107
        %v1109 = vmul.f32 %v1039, 1.442695
        %v1110 = vpow.pop %v1109
        %v1111 = vmul.f32 %v1040, 1.442695
        %v1112 = vpow.pop %v1111
        %v1113 = vmul.f32 %v1041, 1.442695
        %v1114 = vpow.pop %v1113
        %v1115 = vmul.f32 %v1042, 1.442695
        %v1116 = vpow.pop %v1115
        %v1117 = vmul.f32 %v1043, 1.442695
        %v1118 = vpow.pop %v1117
        %v1119 = vmul.f32 %v1044, 1.442695
        %v1120 = vpow.pop %v1119
        %v1121 = vmul.f32 %v1045, 1.442695
        %v1122 = vpow.pop %v1121
        %v1123 = vmul.f32 %v1046, 1.442695
        %v1124 = vpow.pop %v1123
        %v1125 = vmul.f32 %v1047, 1.442695
        %v1126 = vpow.pop %v1125
        %v1127 = vmul.f32 %v1048, 1.442695
        %v1128 = vpow.pop %v1127
        %v1129 = vmul.f32 %v1049, 1.442695
        %v1130 = vpow.pop %v1129
        %v1131 = vmul.f32 %v1050, 1.442695
        %v1132 = vpow.pop %v1131
        %v1133 = vmul.f32 %v1051, 1.442695
        %v1134 = vpow.pop %v1133
        %v1135 = vmul.f32 %v1052, 1.442695
        %v1136 = vpow.pop %v1135
        %v1137 = vmul.f32 %v1053, 1.442695
        %v1138 = vpow.pop %v1137
        %v1139 = vmul.f32 %v1054, 1.442695
        %v1140 = vpow.pop %v1139
        %v1141 = vmul.f32 %v1055, 1.442695
        %v1142 = vpow.pop %v1141
        %v1143 = vmul.f32 %v1056, 1.442695
        %v1144 = vpow.pop %v1143
        %v1145 = vmul.f32 %v1057, 1.442695
        %v1146 = vpow.pop %v1145
        %v1147 = vmul.f32 %v1058, 1.442695
        %v1148 = vpow.pop %v1147
        %v1149 = vmul.f32 %v1059, 1.442695
        %v1150 = vpow.pop %v1149
        %v1151 = vmul.f32 %v1060, 1.442695
        %v1152 = vpow.pop %v1151
        %v1153 = vmul.f32 %v1061, 1.442695
        %v1154 = vpow.pop %v1153
        %v1155 = vmul.f32 %v1062, 1.442695
        %v1156 = vpow.pop %v1155
        %v1157 = vmul.f32 %v1063, 1.442695
        %v1158 = vpow.pop %v1157
        %v1159 = vmul.f32 %v1064, 1.442695
        %v1160 = vpow.pop %v1159
        %v1161 = vsub.f32 %v1098, 1.0
        %v1162 = vsub.f32 %v1100, 1.0
        %v1163 = vsub.f32 %v1102, 1.0
        %v1164 = vsub.f32 %v1104, 1.0
        %v1165 = vsub.f32 %v1106, 1.0
        %v1166 = vsub.f32 %v1108, 1.0
        %v1167 = vsub.f32 %v1110, 1.0
        %v1168 = vsub.f32 %v1112, 1.0
        %v1169 = vsub.f32 %v1114, 1.0
        %v1170 = vsub.f32 %v1116, 1.0
        %v1171 = vsub.f32 %v1118, 1.0
        %v1172 = vsub.f32 %v1120, 1.0
        %v1173 = vsub.f32 %v1122, 1.0
        %v1174 = vsub.f32 %v1124, 1.0
        %v1175 = vsub.f32 %v1126, 1.0
        %v1176 = vsub.f32 %v1128, 1.0
        %v1177 = vsub.f32 %v1130, 1.0
        %v1178 = vsub.f32 %v1132, 1.0
        %v1179 = vsub.f32 %v1134, 1.0
        %v1180 = vsub.f32 %v1136, 1.0
        %v1181 = vsub.f32 %v1138, 1.0
        %v1182 = vsub.f32 %v1140, 1.0
        %v1183 = vsub.f32 %v1142, 1.0
        %v1184 = vsub.f32 %v1144, 1.0
        %v1185 = vsub.f32 %v1146, 1.0
        %v1186 = vsub.f32 %v1148, 1.0
        %v1187 = vsub.f32 %v1150, 1.0
        %v1188 = vsub.f32 %v1152, 1.0
        %v1189 = vsub.f32 %v1154, 1.0
        %v1190 = vsub.f32 %v1156, 1.0
        %v1191 = vsub.f32 %v1158, 1.0
        %v1192 = vsub.f32 %v1160, 1.0
        %v1193 = vsel %vm1065, %v1033, %v1161
        %v1194 = vsel %vm1066, %v1034, %v1162
        %v1195 = vsel %vm1067, %v1035, %v1163
        %v1196 = vsel %vm1068, %v1036, %v1164
        %v1197 = vsel %vm1069, %v1037, %v1165
        %v1198 = vsel %vm1070, %v1038, %v1166
        %v1199 = vsel %vm1071, %v1039, %v1167
        %v1200 = vsel %vm1072, %v1040, %v1168
        %v1201 = vsel %vm1073, %v1041, %v1169
        %v1202 = vsel %vm1074, %v1042, %v1170
        %v1203 = vsel %vm1075, %v1043, %v1171
        %v1204 = vsel %vm1076, %v1044, %v1172
        %v1205 = vsel %vm1077, %v1045, %v1173
        %v1206 = vsel %vm1078, %v1046, %v1174
        %v1207 = vsel %vm1079, %v1047, %v1175
        %v1208 = vsel %vm1080, %v1048, %v1176
        %v1209 = vsel %vm1081, %v1049, %v1177
        %v1210 = vsel %vm1082, %v1050, %v1178
        %v1211 = vsel %vm1083, %v1051, %v1179
        %v1212 = vsel %vm1084, %v1052, %v1180
        %v1213 = vsel %vm1085, %v1053, %v1181
        %v1214 = vsel %vm1086, %v1054, %v1182
        %v1215 = vsel %vm1087, %v1055, %v1183
        %v1216 = vsel %vm1088, %v1056, %v1184
        %v1217 = vsel %vm1089, %v1057, %v1185
        %v1218 = vsel %vm1090, %v1058, %v1186
        %v1219 = vsel %vm1091, %v1059, %v1187
        %v1220 = vsel %vm1092, %v1060, %v1188
        %v1221 = vsel %vm1093, %v1061, %v1189
        %v1222 = vsel %vm1094, %v1062, %v1190
        %v1223 = vsel %vm1095, %v1063, %v1191
        %v1224 = vsel %vm1096, %v1064, %v1192
        %s1225 = sld [smem:[#allocation10]]
        %v1226 = vstv %s1225
        %v1227 = vmul.f32 %v1193, %v1226
        %v1228 = vmul.f32 %v1194, %v1226
        %v1229 = vmul.f32 %v1195, %v1226
        %v1230 = vmul.f32 %v1196, %v1226
        %s1231 = sld [smem:[#allocation11]]
        %v1232 = vstv %s1231
        %v1233 = vadd.f32 %v1227, %v1232
        %v1234 = vadd.f32 %v1228, %v1232
        %v1235 = vadd.f32 %v1229, %v1232
        %v1236 = vadd.f32 %v1230, %v1232
        %s1237 = sld [smem:[#allocation10 + $0x1]]
        %v1238 = vstv %s1237
        %v1239 = vmul.f32 %v1197, %v1238
        %v1240 = vmul.f32 %v1198, %v1238
        %v1241 = vmul.f32 %v1199, %v1238
        %v1242 = vmul.f32 %v1200, %v1238
        %v1243 = vadd.f32 %v1233, %v1239
        %v1244 = vadd.f32 %v1234, %v1240
        %v1245 = vadd.f32 %v1235, %v1241
        %v1246 = vadd.f32 %v1236, %v1242
        %s1247 = sld [smem:[#allocation10 + $0x2]]
        %v1248 = vstv %s1247
        %v1249 = vmul.f32 %v1201, %v1248
        %v1250 = vmul.f32 %v1202, %v1248
        %v1251 = vmul.f32 %v1203, %v1248
        %v1252 = vmul.f32 %v1204, %v1248
        %v1253 = vadd.f32 %v1243, %v1249
        %v1254 = vadd.f32 %v1244, %v1250
        %v1255 = vadd.f32 %v1245, %v1251
        %v1256 = vadd.f32 %v1246, %v1252
        %s1257 = sld [smem:[#allocation10 + $0x3]]
        %v1258 = vstv %s1257
        %v1259 = vmul.f32 %v1205, %v1258
        %v1260 = vmul.f32 %v1206, %v1258
        %v1261 = vmul.f32 %v1207, %v1258
        %v1262 = vmul.f32 %v1208, %v1258
        %v1263 = vadd.f32 %v1253, %v1259
        %v1264 = vadd.f32 %v1254, %v1260
        %v1265 = vadd.f32 %v1255, %v1261
        %v1266 = vadd.f32 %v1256, %v1262
        %s1267 = sld [smem:[#allocation10 + $0x4]]
        %v1268 = vstv %s1267
        %v1269 = vmul.f32 %v1209, %v1268
        %v1270 = vmul.f32 %v1210, %v1268
        %v1271 = vmul.f32 %v1211, %v1268
        %v1272 = vmul.f32 %v1212, %v1268
        %v1273 = vadd.f32 %v1263, %v1269
        %v1274 = vadd.f32 %v1264, %v1270
        %v1275 = vadd.f32 %v1265, %v1271
        %v1276 = vadd.f32 %v1266, %v1272
        %s1277 = sld [smem:[#allocation10 + $0x5]]
        %v1278 = vstv %s1277
        %v1279 = vmul.f32 %v1213, %v1278
        %v1280 = vmul.f32 %v1214, %v1278
        %v1281 = vmul.f32 %v1215, %v1278
        %v1282 = vmul.f32 %v1216, %v1278
        %v1283 = vadd.f32 %v1273, %v1279
        %v1284 = vadd.f32 %v1274, %v1280
        %v1285 = vadd.f32 %v1275, %v1281
        %v1286 = vadd.f32 %v1276, %v1282
        %s1287 = sld [smem:[#allocation10 + $0x6]]
        %v1288 = vstv %s1287
        %v1289 = vmul.f32 %v1217, %v1288
        %v1290 = vmul.f32 %v1218, %v1288
        %v1291 = vmul.f32 %v1219, %v1288
        %v1292 = vmul.f32 %v1220, %v1288
        %v1293 = vadd.f32 %v1283, %v1289
        %v1294 = vadd.f32 %v1284, %v1290
        %v1295 = vadd.f32 %v1285, %v1291
        %v1296 = vadd.f32 %v1286, %v1292
        %s1297 = sld [smem:[#allocation10 + $0x7]]
        %v1298 = vstv %s1297
        %v1299 = vmul.f32 %v1221, %v1298
        %v1300 = vmul.f32 %v1222, %v1298
        %v1301 = vmul.f32 %v1223, %v1298
        %v1302 = vmul.f32 %v1224, %v1298
        %v1303 = vadd.f32 %v1293, %v1299
        %v1304 = vadd.f32 %v1294, %v1300
        %v1305 = vadd.f32 %v1295, %v1301
        %v1306 = vadd.f32 %v1296, %v1302
        %vm1307 = vcmp.gt.f32.partialorder %v1303, 0.0
        %vm1308 = vcmp.gt.f32.partialorder %v1304, 0.0
        %vm1309 = vcmp.gt.f32.partialorder %v1305, 0.0
        %vm1310 = vcmp.gt.f32.partialorder %v1306, 0.0
        %v1311 = vmul.f32 %v1303, 1.442695
        %v1312 = vpow.pop %v1311
        %v1313 = vmul.f32 %v1304, 1.442695
        %v1314 = vpow.pop %v1313
        %v1315 = vmul.f32 %v1305, 1.442695
        %v1316 = vpow.pop %v1315
        %v1317 = vmul.f32 %v1306, 1.442695
        %v1318 = vpow.pop %v1317
        %v1319 = vsub.f32 %v1312, 1.0
        %v1320 = vsub.f32 %v1314, 1.0
        %v1321 = vsub.f32 %v1316, 1.0
        %v1322 = vsub.f32 %v1318, 1.0
        %v1323 = vsel %vm1307, %v1303, %v1319
        %v1324 = vsel %vm1308, %v1304, %v1320
        %v1325 = vsel %vm1309, %v1305, %v1321
        %v1326 = vsel %vm1310, %v1306, %v1322
        %1327 = vst [vmem:[%s302] sm:$0xff] %v1323
        %1328 = vst [vmem:[%s302 + $0x8] sm:$0xff] %v1324
        %1329 = vst [vmem:[%s302 + $0x10] sm:$0xff] %v1325
        %1330 = vst [vmem:[%s302 + $0x18] sm:$0xff] %v1326
        %s1331 = sld [smem:[#allocation10 + $0x80]]
        %v1332 = vstv %s1331
        %v1333 = vmul.f32 %v1193, %v1332
        %v1334 = vmul.f32 %v1194, %v1332
        %v1335 = vmul.f32 %v1195, %v1332
        %v1336 = vmul.f32 %v1196, %v1332
        %s1337 = sld [smem:[#allocation11 + $0x1]]
        %v1338 = vstv %s1337
        %v1339 = vadd.f32 %v1333, %v1338
        %v1340 = vadd.f32 %v1334, %v1338
        %v1341 = vadd.f32 %v1335, %v1338
        %v1342 = vadd.f32 %v1336, %v1338
        %s1343 = sld [smem:[#allocation10 + $0x81]]
        %v1344 = vstv %s1343
        %v1345 = vmul.f32 %v1197, %v1344
        %v1346 = vmul.f32 %v1198, %v1344
        %v1347 = vmul.f32 %v1199, %v1344
        %v1348 = vmul.f32 %v1200, %v1344
        %v1349 = vadd.f32 %v1339, %v1345
        %v1350 = vadd.f32 %v1340, %v1346
        %v1351 = vadd.f32 %v1341, %v1347
        %v1352 = vadd.f32 %v1342, %v1348
        %s1353 = sld [smem:[#allocation10 + $0x82]]
        %v1354 = vstv %s1353
        %v1355 = vmul.f32 %v1201, %v1354
        %v1356 = vmul.f32 %v1202, %v1354
        %v1357 = vmul.f32 %v1203, %v1354
        %v1358 = vmul.f32 %v1204, %v1354
        %v1359 = vadd.f32 %v1349, %v1355
        %v1360 = vadd.f32 %v1350, %v1356
        %v1361 = vadd.f32 %v1351, %v1357
        %v1362 = vadd.f32 %v1352, %v1358
        %s1363 = sld [smem:[#allocation10 + $0x83]]
        %v1364 = vstv %s1363
        %v1365 = vmul.f32 %v1205, %v1364
        %v1366 = vmul.f32 %v1206, %v1364
        %v1367 = vmul.f32 %v1207, %v1364
        %v1368 = vmul.f32 %v1208, %v1364
        %v1369 = vadd.f32 %v1359, %v1365
        %v1370 = vadd.f32 %v1360, %v1366
        %v1371 = vadd.f32 %v1361, %v1367
        %v1372 = vadd.f32 %v1362, %v1368
        %s1373 = sld [smem:[#allocation10 + $0x84]]
        %v1374 = vstv %s1373
        %v1375 = vmul.f32 %v1209, %v1374
        %v1376 = vmul.f32 %v1210, %v1374
        %v1377 = vmul.f32 %v1211, %v1374
        %v1378 = vmul.f32 %v1212, %v1374
        %v1379 = vadd.f32 %v1369, %v1375
        %v1380 = vadd.f32 %v1370, %v1376
        %v1381 = vadd.f32 %v1371, %v1377
        %v1382 = vadd.f32 %v1372, %v1378
        %s1383 = sld [smem:[#allocation10 + $0x85]]
        %v1384 = vstv %s1383
        %v1385 = vmul.f32 %v1213, %v1384
        %v1386 = vmul.f32 %v1214, %v1384
        %v1387 = vmul.f32 %v1215, %v1384
        %v1388 = vmul.f32 %v1216, %v1384
        %v1389 = vadd.f32 %v1379, %v1385
        %v1390 = vadd.f32 %v1380, %v1386
        %v1391 = vadd.f32 %v1381, %v1387
        %v1392 = vadd.f32 %v1382, %v1388
        %s1393 = sld [smem:[#allocation10 + $0x86]]
        %v1394 = vstv %s1393
        %v1395 = vmul.f32 %v1217, %v1394
        %v1396 = vmul.f32 %v1218, %v1394
        %v1397 = vmul.f32 %v1219, %v1394
        %v1398 = vmul.f32 %v1220, %v1394
        %v1399 = vadd.f32 %v1389, %v1395
        %v1400 = vadd.f32 %v1390, %v1396
        %v1401 = vadd.f32 %v1391, %v1397
        %v1402 = vadd.f32 %v1392, %v1398
        %s1403 = sld [smem:[#allocation10 + $0x87]]
        %v1404 = vstv %s1403
        %v1405 = vmul.f32 %v1221, %v1404
        %v1406 = vmul.f32 %v1222, %v1404
        %v1407 = vmul.f32 %v1223, %v1404
        %v1408 = vmul.f32 %v1224, %v1404
        %v1409 = vadd.f32 %v1399, %v1405
        %v1410 = vadd.f32 %v1400, %v1406
        %v1411 = vadd.f32 %v1401, %v1407
        %v1412 = vadd.f32 %v1402, %v1408
        %vm1413 = vcmp.gt.f32.partialorder %v1409, 0.0
        %vm1414 = vcmp.gt.f32.partialorder %v1410, 0.0
        %vm1415 = vcmp.gt.f32.partialorder %v1411, 0.0
        %vm1416 = vcmp.gt.f32.partialorder %v1412, 0.0
        %v1417 = vmul.f32 %v1409, 1.442695
        %v1418 = vpow.pop %v1417
        %v1419 = vmul.f32 %v1410, 1.442695
        %v1420 = vpow.pop %v1419
        %v1421 = vmul.f32 %v1411, 1.442695
        %v1422 = vpow.pop %v1421
        %v1423 = vmul.f32 %v1412, 1.442695
        %v1424 = vpow.pop %v1423
        %v1425 = vsub.f32 %v1418, 1.0
        %v1426 = vsub.f32 %v1420, 1.0
        %v1427 = vsub.f32 %v1422, 1.0
        %v1428 = vsub.f32 %v1424, 1.0
        %v1429 = vsel %vm1413, %v1409, %v1425
        %v1430 = vsel %vm1414, %v1410, %v1426
        %v1431 = vsel %vm1415, %v1411, %v1427
        %v1432 = vsel %vm1416, %v1412, %v1428
        %1433 = vst [vmem:[%s302 + $0x20] sm:$0xff] %v1429
        %1434 = vst [vmem:[%s302 + $0x28] sm:$0xff] %v1430
        %1435 = vst [vmem:[%s302 + $0x30] sm:$0xff] %v1431
        %1436 = vst [vmem:[%s302 + $0x38] sm:$0xff] %v1432
        %s1437 = sld [smem:[#allocation10 + $0x100]]
        %v1438 = vstv %s1437
        %v1439 = vmul.f32 %v1193, %v1438
        %v1440 = vmul.f32 %v1194, %v1438
        %v1441 = vmul.f32 %v1195, %v1438
        %v1442 = vmul.f32 %v1196, %v1438
        %s1443 = sld [smem:[#allocation11 + $0x2]]
        %v1444 = vstv %s1443
        %v1445 = vadd.f32 %v1439, %v1444
        %v1446 = vadd.f32 %v1440, %v1444
        %v1447 = vadd.f32 %v1441, %v1444
        %v1448 = vadd.f32 %v1442, %v1444
        %s1449 = sld [smem:[#allocation10 + $0x101]]
        %v1450 = vstv %s1449
        %v1451 = vmul.f32 %v1197, %v1450
        %v1452 = vmul.f32 %v1198, %v1450
        %v1453 = vmul.f32 %v1199, %v1450
        %v1454 = vmul.f32 %v1200, %v1450
        %v1455 = vadd.f32 %v1445, %v1451
        %v1456 = vadd.f32 %v1446, %v1452
        %v1457 = vadd.f32 %v1447, %v1453
        %v1458 = vadd.f32 %v1448, %v1454
        %s1459 = sld [smem:[#allocation10 + $0x102]]
        %v1460 = vstv %s1459
        %v1461 = vmul.f32 %v1201, %v1460
        %v1462 = vmul.f32 %v1202, %v1460
        %v1463 = vmul.f32 %v1203, %v1460
        %v1464 = vmul.f32 %v1204, %v1460
        %v1465 = vadd.f32 %v1455, %v1461
        %v1466 = vadd.f32 %v1456, %v1462
        %v1467 = vadd.f32 %v1457, %v1463
        %v1468 = vadd.f32 %v1458, %v1464
        %s1469 = sld [smem:[#allocation10 + $0x103]]
        %v1470 = vstv %s1469
        %v1471 = vmul.f32 %v1205, %v1470
        %v1472 = vmul.f32 %v1206, %v1470
        %v1473 = vmul.f32 %v1207, %v1470
        %v1474 = vmul.f32 %v1208, %v1470
        %v1475 = vadd.f32 %v1465, %v1471
        %v1476 = vadd.f32 %v1466, %v1472
        %v1477 = vadd.f32 %v1467, %v1473
        %v1478 = vadd.f32 %v1468, %v1474
        %s1479 = sld [smem:[#allocation10 + $0x104]]
        %v1480 = vstv %s1479
        %v1481 = vmul.f32 %v1209, %v1480
        %v1482 = vmul.f32 %v1210, %v1480
        %v1483 = vmul.f32 %v1211, %v1480
        %v1484 = vmul.f32 %v1212, %v1480
        %v1485 = vadd.f32 %v1475, %v1481
        %v1486 = vadd.f32 %v1476, %v1482
        %v1487 = vadd.f32 %v1477, %v1483
        %v1488 = vadd.f32 %v1478, %v1484
        %s1489 = sld [smem:[#allocation10 + $0x105]]
        %v1490 = vstv %s1489
        %v1491 = vmul.f32 %v1213, %v1490
        %v1492 = vmul.f32 %v1214, %v1490
        %v1493 = vmul.f32 %v1215, %v1490
        %v1494 = vmul.f32 %v1216, %v1490
        %v1495 = vadd.f32 %v1485, %v1491
        %v1496 = vadd.f32 %v1486, %v1492
        %v1497 = vadd.f32 %v1487, %v1493
        %v1498 = vadd.f32 %v1488, %v1494
        %s1499 = sld [smem:[#allocation10 + $0x106]]
        %v1500 = vstv %s1499
        %v1501 = vmul.f32 %v1217, %v1500
        %v1502 = vmul.f32 %v1218, %v1500
        %v1503 = vmul.f32 %v1219, %v1500
        %v1504 = vmul.f32 %v1220, %v1500
        %v1505 = vadd.f32 %v1495, %v1501
        %v1506 = vadd.f32 %v1496, %v1502
        %v1507 = vadd.f32 %v1497, %v1503
        %v1508 = vadd.f32 %v1498, %v1504
        %s1509 = sld [smem:[#allocation10 + $0x107]]
        %v1510 = vstv %s1509
        %v1511 = vmul.f32 %v1221, %v1510
        %v1512 = vmul.f32 %v1222, %v1510
        %v1513 = vmul.f32 %v1223, %v1510
        %v1514 = vmul.f32 %v1224, %v1510
        %v1515 = vadd.f32 %v1505, %v1511
        %v1516 = vadd.f32 %v1506, %v1512
        %v1517 = vadd.f32 %v1507, %v1513
        %v1518 = vadd.f32 %v1508, %v1514
        %vm1519 = vcmp.gt.f32.partialorder %v1515, 0.0
        %vm1520 = vcmp.gt.f32.partialorder %v1516, 0.0
        %vm1521 = vcmp.gt.f32.partialorder %v1517, 0.0
        %vm1522 = vcmp.gt.f32.partialorder %v1518, 0.0
        %v1523 = vmul.f32 %v1515, 1.442695
        %v1524 = vpow.pop %v1523
        %v1525 = vmul.f32 %v1516, 1.442695
        %v1526 = vpow.pop %v1525
        %v1527 = vmul.f32 %v1517, 1.442695
        %v1528 = vpow.pop %v1527
        %v1529 = vmul.f32 %v1518, 1.442695
        %v1530 = vpow.pop %v1529
        %v1531 = vsub.f32 %v1524, 1.0
        %v1532 = vsub.f32 %v1526, 1.0
        %v1533 = vsub.f32 %v1528, 1.0
        %v1534 = vsub.f32 %v1530, 1.0
        %v1535 = vsel %vm1519, %v1515, %v1531
        %v1536 = vsel %vm1520, %v1516, %v1532
        %v1537 = vsel %vm1521, %v1517, %v1533
        %v1538 = vsel %vm1522, %v1518, %v1534
        %1539 = vst [vmem:[%s302 + $0x40] sm:$0xff] %v1535
        %1540 = vst [vmem:[%s302 + $0x48] sm:$0xff] %v1536
        %1541 = vst [vmem:[%s302 + $0x50] sm:$0xff] %v1537
        %1542 = vst [vmem:[%s302 + $0x58] sm:$0xff] %v1538
        %s1543 = sld [smem:[#allocation10 + $0x180]]
        %v1544 = vstv %s1543
        %v1545 = vmul.f32 %v1193, %v1544
        %v1546 = vmul.f32 %v1194, %v1544
        %v1547 = vmul.f32 %v1195, %v1544
        %v1548 = vmul.f32 %v1196, %v1544
        %s1549 = sld [smem:[#allocation11 + $0x3]]
        %v1550 = vstv %s1549
        %v1551 = vadd.f32 %v1545, %v1550
        %v1552 = vadd.f32 %v1546, %v1550
        %v1553 = vadd.f32 %v1547, %v1550
        %v1554 = vadd.f32 %v1548, %v1550
        %s1555 = sld [smem:[#allocation10 + $0x181]]
        %v1556 = vstv %s1555
        %v1557 = vmul.f32 %v1197, %v1556
        %v1558 = vmul.f32 %v1198, %v1556
        %v1559 = vmul.f32 %v1199, %v1556
        %v1560 = vmul.f32 %v1200, %v1556
        %v1561 = vadd.f32 %v1551, %v1557
        %v1562 = vadd.f32 %v1552, %v1558
        %v1563 = vadd.f32 %v1553, %v1559
        %v1564 = vadd.f32 %v1554, %v1560
        %s1565 = sld [smem:[#allocation10 + $0x182]]
        %v1566 = vstv %s1565
        %v1567 = vmul.f32 %v1201, %v1566
        %v1568 = vmul.f32 %v1202, %v1566
        %v1569 = vmul.f32 %v1203, %v1566
        %v1570 = vmul.f32 %v1204, %v1566
        %v1571 = vadd.f32 %v1561, %v1567
        %v1572 = vadd.f32 %v1562, %v1568
        %v1573 = vadd.f32 %v1563, %v1569
        %v1574 = vadd.f32 %v1564, %v1570
        %s1575 = sld [smem:[#allocation10 + $0x183]]
        %v1576 = vstv %s1575
        %v1577 = vmul.f32 %v1205, %v1576
        %v1578 = vmul.f32 %v1206, %v1576
        %v1579 = vmul.f32 %v1207, %v1576
        %v1580 = vmul.f32 %v1208, %v1576
        %v1581 = vadd.f32 %v1571, %v1577
        %v1582 = vadd.f32 %v1572, %v1578
        %v1583 = vadd.f32 %v1573, %v1579
        %v1584 = vadd.f32 %v1574, %v1580
        %s1585 = sld [smem:[#allocation10 + $0x184]]
        %v1586 = vstv %s1585
        %v1587 = vmul.f32 %v1209, %v1586
        %v1588 = vmul.f32 %v1210, %v1586
        %v1589 = vmul.f32 %v1211, %v1586
        %v1590 = vmul.f32 %v1212, %v1586
        %v1591 = vadd.f32 %v1581, %v1587
        %v1592 = vadd.f32 %v1582, %v1588
        %v1593 = vadd.f32 %v1583, %v1589
        %v1594 = vadd.f32 %v1584, %v1590
        %s1595 = sld [smem:[#allocation10 + $0x185]]
        %v1596 = vstv %s1595
        %v1597 = vmul.f32 %v1213, %v1596
        %v1598 = vmul.f32 %v1214, %v1596
        %v1599 = vmul.f32 %v1215, %v1596
        %v1600 = vmul.f32 %v1216, %v1596
        %v1601 = vadd.f32 %v1591, %v1597
        %v1602 = vadd.f32 %v1592, %v1598
        %v1603 = vadd.f32 %v1593, %v1599
        %v1604 = vadd.f32 %v1594, %v1600
        %s1605 = sld [smem:[#allocation10 + $0x186]]
        %v1606 = vstv %s1605
        %v1607 = vmul.f32 %v1217, %v1606
        %v1608 = vmul.f32 %v1218, %v1606
        %v1609 = vmul.f32 %v1219, %v1606
        %v1610 = vmul.f32 %v1220, %v1606
        %v1611 = vadd.f32 %v1601, %v1607
        %v1612 = vadd.f32 %v1602, %v1608
        %v1613 = vadd.f32 %v1603, %v1609
        %v1614 = vadd.f32 %v1604, %v1610
        %s1615 = sld [smem:[#allocation10 + $0x187]]
        %v1616 = vstv %s1615
        %v1617 = vmul.f32 %v1221, %v1616
        %v1618 = vmul.f32 %v1222, %v1616
        %v1619 = vmul.f32 %v1223, %v1616
        %v1620 = vmul.f32 %v1224, %v1616
        %v1621 = vadd.f32 %v1611, %v1617
        %v1622 = vadd.f32 %v1612, %v1618
        %v1623 = vadd.f32 %v1613, %v1619
        %v1624 = vadd.f32 %v1614, %v1620
        %vm1625 = vcmp.gt.f32.partialorder %v1621, 0.0
        %vm1626 = vcmp.gt.f32.partialorder %v1622, 0.0
        %vm1627 = vcmp.gt.f32.partialorder %v1623, 0.0
        %vm1628 = vcmp.gt.f32.partialorder %v1624, 0.0
        %v1629 = vmul.f32 %v1621, 1.442695
        %v1630 = vpow.pop %v1629
        %v1631 = vmul.f32 %v1622, 1.442695
        %v1632 = vpow.pop %v1631
        %v1633 = vmul.f32 %v1623, 1.442695
        %v1634 = vpow.pop %v1633
        %v1635 = vmul.f32 %v1624, 1.442695
        %v1636 = vpow.pop %v1635
        %v1637 = vsub.f32 %v1630, 1.0
        %v1638 = vsub.f32 %v1632, 1.0
        %v1639 = vsub.f32 %v1634, 1.0
        %v1640 = vsub.f32 %v1636, 1.0
        %v1641 = vsel %vm1625, %v1621, %v1637
        %v1642 = vsel %vm1626, %v1622, %v1638
        %v1643 = vsel %vm1627, %v1623, %v1639
        %v1644 = vsel %vm1628, %v1624, %v1640
        %1645 = vst [vmem:[%s302 + $0x60] sm:$0xff] %v1641
        %1646 = vst [vmem:[%s302 + $0x68] sm:$0xff] %v1642
        %1647 = vst [vmem:[%s302 + $0x70] sm:$0xff] %v1643
        %1648 = vst [vmem:[%s302 + $0x78] sm:$0xff] %v1644
        %s1649 = sld [smem:[#allocation10 + $0x200]]
        %v1650 = vstv %s1649
        %v1651 = vmul.f32 %v1193, %v1650
        %v1652 = vmul.f32 %v1194, %v1650
        %v1653 = vmul.f32 %v1195, %v1650
        %v1654 = vmul.f32 %v1196, %v1650
        %s1655 = sld [smem:[#allocation11 + $0x4]]
        %v1656 = vstv %s1655
        %v1657 = vadd.f32 %v1651, %v1656
        %v1658 = vadd.f32 %v1652, %v1656
        %v1659 = vadd.f32 %v1653, %v1656
        %v1660 = vadd.f32 %v1654, %v1656
        %s1661 = sld [smem:[#allocation10 + $0x201]]
        %v1662 = vstv %s1661
        %v1663 = vmul.f32 %v1197, %v1662
        %v1664 = vmul.f32 %v1198, %v1662
        %v1665 = vmul.f32 %v1199, %v1662
        %v1666 = vmul.f32 %v1200, %v1662
        %v1667 = vadd.f32 %v1657, %v1663
        %v1668 = vadd.f32 %v1658, %v1664
        %v1669 = vadd.f32 %v1659, %v1665
        %v1670 = vadd.f32 %v1660, %v1666
        %s1671 = sld [smem:[#allocation10 + $0x202]]
        %v1672 = vstv %s1671
        %v1673 = vmul.f32 %v1201, %v1672
        %v1674 = vmul.f32 %v1202, %v1672
        %v1675 = vmul.f32 %v1203, %v1672
        %v1676 = vmul.f32 %v1204, %v1672
        %v1677 = vadd.f32 %v1667, %v1673
        %v1678 = vadd.f32 %v1668, %v1674
        %v1679 = vadd.f32 %v1669, %v1675
        %v1680 = vadd.f32 %v1670, %v1676
        %s1681 = sld [smem:[#allocation10 + $0x203]]
        %v1682 = vstv %s1681
        %v1683 = vmul.f32 %v1205, %v1682
        %v1684 = vmul.f32 %v1206, %v1682
        %v1685 = vmul.f32 %v1207, %v1682
        %v1686 = vmul.f32 %v1208, %v1682
        %v1687 = vadd.f32 %v1677, %v1683
        %v1688 = vadd.f32 %v1678, %v1684
        %v1689 = vadd.f32 %v1679, %v1685
        %v1690 = vadd.f32 %v1680, %v1686
        %s1691 = sld [smem:[#allocation10 + $0x204]]
        %v1692 = vstv %s1691
        %v1693 = vmul.f32 %v1209, %v1692
        %v1694 = vmul.f32 %v1210, %v1692
        %v1695 = vmul.f32 %v1211, %v1692
        %v1696 = vmul.f32 %v1212, %v1692
        %v1697 = vadd.f32 %v1687, %v1693
        %v1698 = vadd.f32 %v1688, %v1694
        %v1699 = vadd.f32 %v1689, %v1695
        %v1700 = vadd.f32 %v1690, %v1696
        %s1701 = sld [smem:[#allocation10 + $0x205]]
        %v1702 = vstv %s1701
        %v1703 = vmul.f32 %v1213, %v1702
        %v1704 = vmul.f32 %v1214, %v1702
        %v1705 = vmul.f32 %v1215, %v1702
        %v1706 = vmul.f32 %v1216, %v1702
        %v1707 = vadd.f32 %v1697, %v1703
        %v1708 = vadd.f32 %v1698, %v1704
        %v1709 = vadd.f32 %v1699, %v1705
        %v1710 = vadd.f32 %v1700, %v1706
        %s1711 = sld [smem:[#allocation10 + $0x206]]
        %v1712 = vstv %s1711
        %v1713 = vmul.f32 %v1217, %v1712
        %v1714 = vmul.f32 %v1218, %v1712
        %v1715 = vmul.f32 %v1219, %v1712
        %v1716 = vmul.f32 %v1220, %v1712
        %v1717 = vadd.f32 %v1707, %v1713
        %v1718 = vadd.f32 %v1708, %v1714
        %v1719 = vadd.f32 %v1709, %v1715
        %v1720 = vadd.f32 %v1710, %v1716
        %s1721 = sld [smem:[#allocation10 + $0x207]]
        %v1722 = vstv %s1721
        %v1723 = vmul.f32 %v1221, %v1722
        %v1724 = vmul.f32 %v1222, %v1722
        %v1725 = vmul.f32 %v1223, %v1722
        %v1726 = vmul.f32 %v1224, %v1722
        %v1727 = vadd.f32 %v1717, %v1723
        %v1728 = vadd.f32 %v1718, %v1724
        %v1729 = vadd.f32 %v1719, %v1725
        %v1730 = vadd.f32 %v1720, %v1726
        %vm1731 = vcmp.gt.f32.partialorder %v1727, 0.0
        %vm1732 = vcmp.gt.f32.partialorder %v1728, 0.0
        %vm1733 = vcmp.gt.f32.partialorder %v1729, 0.0
        %vm1734 = vcmp.gt.f32.partialorder %v1730, 0.0
        %v1735 = vmul.f32 %v1727, 1.442695
        %v1736 = vpow.pop %v1735
        %v1737 = vmul.f32 %v1728, 1.442695
        %v1738 = vpow.pop %v1737
        %v1739 = vmul.f32 %v1729, 1.442695
        %v1740 = vpow.pop %v1739
        %v1741 = vmul.f32 %v1730, 1.442695
        %v1742 = vpow.pop %v1741
        %v1743 = vsub.f32 %v1736, 1.0
        %v1744 = vsub.f32 %v1738, 1.0
        %v1745 = vsub.f32 %v1740, 1.0
        %v1746 = vsub.f32 %v1742, 1.0
        %v1747 = vsel %vm1731, %v1727, %v1743
        %v1748 = vsel %vm1732, %v1728, %v1744
        %v1749 = vsel %vm1733, %v1729, %v1745
        %v1750 = vsel %vm1734, %v1730, %v1746
        %1751 = vst [vmem:[%s302 + $0x80] sm:$0xff] %v1747
        %1752 = vst [vmem:[%s302 + $0x88] sm:$0xff] %v1748
        %1753 = vst [vmem:[%s302 + $0x90] sm:$0xff] %v1749
        %1754 = vst [vmem:[%s302 + $0x98] sm:$0xff] %v1750
        %s1755 = sld [smem:[#allocation10 + $0x280]]
        %v1756 = vstv %s1755
        %v1757 = vmul.f32 %v1193, %v1756
        %v1758 = vmul.f32 %v1194, %v1756
        %v1759 = vmul.f32 %v1195, %v1756
        %v1760 = vmul.f32 %v1196, %v1756
        %s1761 = sld [smem:[#allocation11 + $0x5]]
        %v1762 = vstv %s1761
        %v1763 = vadd.f32 %v1757, %v1762
        %v1764 = vadd.f32 %v1758, %v1762
        %v1765 = vadd.f32 %v1759, %v1762
        %v1766 = vadd.f32 %v1760, %v1762
        %s1767 = sld [smem:[#allocation10 + $0x281]]
        %v1768 = vstv %s1767
        %v1769 = vmul.f32 %v1197, %v1768
        %v1770 = vmul.f32 %v1198, %v1768
        %v1771 = vmul.f32 %v1199, %v1768
        %v1772 = vmul.f32 %v1200, %v1768
        %v1773 = vadd.f32 %v1763, %v1769
        %v1774 = vadd.f32 %v1764, %v1770
        %v1775 = vadd.f32 %v1765, %v1771
        %v1776 = vadd.f32 %v1766, %v1772
        %s1777 = sld [smem:[#allocation10 + $0x282]]
        %v1778 = vstv %s1777
        %v1779 = vmul.f32 %v1201, %v1778
        %v1780 = vmul.f32 %v1202, %v1778
        %v1781 = vmul.f32 %v1203, %v1778
        %v1782 = vmul.f32 %v1204, %v1778
        %v1783 = vadd.f32 %v1773, %v1779
        %v1784 = vadd.f32 %v1774, %v1780
        %v1785 = vadd.f32 %v1775, %v1781
        %v1786 = vadd.f32 %v1776, %v1782
        %s1787 = sld [smem:[#allocation10 + $0x283]]
        %v1788 = vstv %s1787
        %v1789 = vmul.f32 %v1205, %v1788
        %v1790 = vmul.f32 %v1206, %v1788
        %v1791 = vmul.f32 %v1207, %v1788
        %v1792 = vmul.f32 %v1208, %v1788
        %v1793 = vadd.f32 %v1783, %v1789
        %v1794 = vadd.f32 %v1784, %v1790
        %v1795 = vadd.f32 %v1785, %v1791
        %v1796 = vadd.f32 %v1786, %v1792
        %s1797 = sld [smem:[#allocation10 + $0x284]]
        %v1798 = vstv %s1797
        %v1799 = vmul.f32 %v1209, %v1798
        %v1800 = vmul.f32 %v1210, %v1798
        %v1801 = vmul.f32 %v1211, %v1798
        %v1802 = vmul.f32 %v1212, %v1798
        %v1803 = vadd.f32 %v1793, %v1799
        %v1804 = vadd.f32 %v1794, %v1800
        %v1805 = vadd.f32 %v1795, %v1801
        %v1806 = vadd.f32 %v1796, %v1802
        %s1807 = sld [smem:[#allocation10 + $0x285]]
        %v1808 = vstv %s1807
        %v1809 = vmul.f32 %v1213, %v1808
        %v1810 = vmul.f32 %v1214, %v1808
        %v1811 = vmul.f32 %v1215, %v1808
        %v1812 = vmul.f32 %v1216, %v1808
        %v1813 = vadd.f32 %v1803, %v1809
        %v1814 = vadd.f32 %v1804, %v1810
        %v1815 = vadd.f32 %v1805, %v1811
        %v1816 = vadd.f32 %v1806, %v1812
        %s1817 = sld [smem:[#allocation10 + $0x286]]
        %v1818 = vstv %s1817
        %v1819 = vmul.f32 %v1217, %v1818
        %v1820 = vmul.f32 %v1218, %v1818
        %v1821 = vmul.f32 %v1219, %v1818
        %v1822 = vmul.f32 %v1220, %v1818
        %v1823 = vadd.f32 %v1813, %v1819
        %v1824 = vadd.f32 %v1814, %v1820
        %v1825 = vadd.f32 %v1815, %v1821
        %v1826 = vadd.f32 %v1816, %v1822
        %s1827 = sld [smem:[#allocation10 + $0x287]]
        %v1828 = vstv %s1827
        %v1829 = vmul.f32 %v1221, %v1828
        %v1830 = vmul.f32 %v1222, %v1828
        %v1831 = vmul.f32 %v1223, %v1828
        %v1832 = vmul.f32 %v1224, %v1828
        %v1833 = vadd.f32 %v1823, %v1829
        %v1834 = vadd.f32 %v1824, %v1830
        %v1835 = vadd.f32 %v1825, %v1831
        %v1836 = vadd.f32 %v1826, %v1832
        %vm1837 = vcmp.gt.f32.partialorder %v1833, 0.0
        %vm1838 = vcmp.gt.f32.partialorder %v1834, 0.0
        %vm1839 = vcmp.gt.f32.partialorder %v1835, 0.0
        %vm1840 = vcmp.gt.f32.partialorder %v1836, 0.0
        %v1841 = vmul.f32 %v1833, 1.442695
        %v1842 = vpow.pop %v1841
        %v1843 = vmul.f32 %v1834, 1.442695
        %v1844 = vpow.pop %v1843
        %v1845 = vmul.f32 %v1835, 1.442695
        %v1846 = vpow.pop %v1845
        %v1847 = vmul.f32 %v1836, 1.442695
        %v1848 = vpow.pop %v1847
        %v1849 = vsub.f32 %v1842, 1.0
        %v1850 = vsub.f32 %v1844, 1.0
        %v1851 = vsub.f32 %v1846, 1.0
        %v1852 = vsub.f32 %v1848, 1.0
        %v1853 = vsel %vm1837, %v1833, %v1849
        %v1854 = vsel %vm1838, %v1834, %v1850
        %v1855 = vsel %vm1839, %v1835, %v1851
        %v1856 = vsel %vm1840, %v1836, %v1852
        %1857 = vst [vmem:[%s302 + $0xa0] sm:$0xff] %v1853
        %1858 = vst [vmem:[%s302 + $0xa8] sm:$0xff] %v1854
        %1859 = vst [vmem:[%s302 + $0xb0] sm:$0xff] %v1855
        %1860 = vst [vmem:[%s302 + $0xb8] sm:$0xff] %v1856
        %s1861 = sld [smem:[#allocation10 + $0x300]]
        %v1862 = vstv %s1861
        %v1863 = vmul.f32 %v1193, %v1862
        %v1864 = vmul.f32 %v1194, %v1862
        %v1865 = vmul.f32 %v1195, %v1862
        %v1866 = vmul.f32 %v1196, %v1862
        %s1867 = sld [smem:[#allocation11 + $0x6]]
        %v1868 = vstv %s1867
        %v1869 = vadd.f32 %v1863, %v1868
        %v1870 = vadd.f32 %v1864, %v1868
        %v1871 = vadd.f32 %v1865, %v1868
        %v1872 = vadd.f32 %v1866, %v1868
        %s1873 = sld [smem:[#allocation10 + $0x301]]
        %v1874 = vstv %s1873
        %v1875 = vmul.f32 %v1197, %v1874
        %v1876 = vmul.f32 %v1198, %v1874
        %v1877 = vmul.f32 %v1199, %v1874
        %v1878 = vmul.f32 %v1200, %v1874
        %v1879 = vadd.f32 %v1869, %v1875
        %v1880 = vadd.f32 %v1870, %v1876
        %v1881 = vadd.f32 %v1871, %v1877
        %v1882 = vadd.f32 %v1872, %v1878
        %s1883 = sld [smem:[#allocation10 + $0x302]]
        %v1884 = vstv %s1883
        %v1885 = vmul.f32 %v1201, %v1884
        %v1886 = vmul.f32 %v1202, %v1884
        %v1887 = vmul.f32 %v1203, %v1884
        %v1888 = vmul.f32 %v1204, %v1884
        %v1889 = vadd.f32 %v1879, %v1885
        %v1890 = vadd.f32 %v1880, %v1886
        %v1891 = vadd.f32 %v1881, %v1887
        %v1892 = vadd.f32 %v1882, %v1888
        %s1893 = sld [smem:[#allocation10 + $0x303]]
        %v1894 = vstv %s1893
        %v1895 = vmul.f32 %v1205, %v1894
        %v1896 = vmul.f32 %v1206, %v1894
        %v1897 = vmul.f32 %v1207, %v1894
        %v1898 = vmul.f32 %v1208, %v1894
        %v1899 = vadd.f32 %v1889, %v1895
        %v1900 = vadd.f32 %v1890, %v1896
        %v1901 = vadd.f32 %v1891, %v1897
        %v1902 = vadd.f32 %v1892, %v1898
        %s1903 = sld [smem:[#allocation10 + $0x304]]
        %v1904 = vstv %s1903
        %v1905 = vmul.f32 %v1209, %v1904
        %v1906 = vmul.f32 %v1210, %v1904
        %v1907 = vmul.f32 %v1211, %v1904
        %v1908 = vmul.f32 %v1212, %v1904
        %v1909 = vadd.f32 %v1899, %v1905
        %v1910 = vadd.f32 %v1900, %v1906
        %v1911 = vadd.f32 %v1901, %v1907
        %v1912 = vadd.f32 %v1902, %v1908
        %s1913 = sld [smem:[#allocation10 + $0x305]]
        %v1914 = vstv %s1913
        %v1915 = vmul.f32 %v1213, %v1914
        %v1916 = vmul.f32 %v1214, %v1914
        %v1917 = vmul.f32 %v1215, %v1914
        %v1918 = vmul.f32 %v1216, %v1914
        %v1919 = vadd.f32 %v1909, %v1915
        %v1920 = vadd.f32 %v1910, %v1916
        %v1921 = vadd.f32 %v1911, %v1917
        %v1922 = vadd.f32 %v1912, %v1918
        %s1923 = sld [smem:[#allocation10 + $0x306]]
        %v1924 = vstv %s1923
        %v1925 = vmul.f32 %v1217, %v1924
        %v1926 = vmul.f32 %v1218, %v1924
        %v1927 = vmul.f32 %v1219, %v1924
        %v1928 = vmul.f32 %v1220, %v1924
        %v1929 = vadd.f32 %v1919, %v1925
        %v1930 = vadd.f32 %v1920, %v1926
        %v1931 = vadd.f32 %v1921, %v1927
        %v1932 = vadd.f32 %v1922, %v1928
        %s1933 = sld [smem:[#allocation10 + $0x307]]
        %v1934 = vstv %s1933
        %v1935 = vmul.f32 %v1221, %v1934
        %v1936 = vmul.f32 %v1222, %v1934
        %v1937 = vmul.f32 %v1223, %v1934
        %v1938 = vmul.f32 %v1224, %v1934
        %v1939 = vadd.f32 %v1929, %v1935
        %v1940 = vadd.f32 %v1930, %v1936
        %v1941 = vadd.f32 %v1931, %v1937
        %v1942 = vadd.f32 %v1932, %v1938
        %vm1943 = vcmp.gt.f32.partialorder %v1939, 0.0
        %vm1944 = vcmp.gt.f32.partialorder %v1940, 0.0
        %vm1945 = vcmp.gt.f32.partialorder %v1941, 0.0
        %vm1946 = vcmp.gt.f32.partialorder %v1942, 0.0
        %v1947 = vmul.f32 %v1939, 1.442695
        %v1948 = vpow.pop %v1947
        %v1949 = vmul.f32 %v1940, 1.442695
        %v1950 = vpow.pop %v1949
        %v1951 = vmul.f32 %v1941, 1.442695
        %v1952 = vpow.pop %v1951
        %v1953 = vmul.f32 %v1942, 1.442695
        %v1954 = vpow.pop %v1953
        %v1955 = vsub.f32 %v1948, 1.0
        %v1956 = vsub.f32 %v1950, 1.0
        %v1957 = vsub.f32 %v1952, 1.0
        %v1958 = vsub.f32 %v1954, 1.0
        %v1959 = vsel %vm1943, %v1939, %v1955
        %v1960 = vsel %vm1944, %v1940, %v1956
        %v1961 = vsel %vm1945, %v1941, %v1957
        %v1962 = vsel %vm1946, %v1942, %v1958
        %1963 = vst [vmem:[%s302 + $0xc0] sm:$0xff] %v1959
        %1964 = vst [vmem:[%s302 + $0xc8] sm:$0xff] %v1960
        %1965 = vst [vmem:[%s302 + $0xd0] sm:$0xff] %v1961
        %1966 = vst [vmem:[%s302 + $0xd8] sm:$0xff] %v1962
        %s1967 = sld [smem:[#allocation10 + $0x380]]
        %v1968 = vstv %s1967
        %v1969 = vmul.f32 %v1193, %v1968
        %v1970 = vmul.f32 %v1194, %v1968
        %v1971 = vmul.f32 %v1195, %v1968
        %v1972 = vmul.f32 %v1196, %v1968
        %s1973 = sld [smem:[#allocation11 + $0x7]]
        %v1974 = vstv %s1973
        %v1975 = vadd.f32 %v1969, %v1974
        %v1976 = vadd.f32 %v1970, %v1974
        %v1977 = vadd.f32 %v1971, %v1974
        %v1978 = vadd.f32 %v1972, %v1974
        %s1979 = sld [smem:[#allocation10 + $0x381]]
        %v1980 = vstv %s1979
        %v1981 = vmul.f32 %v1197, %v1980
        %v1982 = vmul.f32 %v1198, %v1980
        %v1983 = vmul.f32 %v1199, %v1980
        %v1984 = vmul.f32 %v1200, %v1980
        %v1985 = vadd.f32 %v1975, %v1981
        %v1986 = vadd.f32 %v1976, %v1982
        %v1987 = vadd.f32 %v1977, %v1983
        %v1988 = vadd.f32 %v1978, %v1984
        %s1989 = sld [smem:[#allocation10 + $0x382]]
        %v1990 = vstv %s1989
        %v1991 = vmul.f32 %v1201, %v1990
        %v1992 = vmul.f32 %v1202, %v1990
        %v1993 = vmul.f32 %v1203, %v1990
        %v1994 = vmul.f32 %v1204, %v1990
        %v1995 = vadd.f32 %v1985, %v1991
        %v1996 = vadd.f32 %v1986, %v1992
        %v1997 = vadd.f32 %v1987, %v1993
        %v1998 = vadd.f32 %v1988, %v1994
        %s1999 = sld [smem:[#allocation10 + $0x383]]
        %v2000 = vstv %s1999
        %v2001 = vmul.f32 %v1205, %v2000
        %v2002 = vmul.f32 %v1206, %v2000
        %v2003 = vmul.f32 %v1207, %v2000
        %v2004 = vmul.f32 %v1208, %v2000
        %v2005 = vadd.f32 %v1995, %v2001
        %v2006 = vadd.f32 %v1996, %v2002
        %v2007 = vadd.f32 %v1997, %v2003
        %v2008 = vadd.f32 %v1998, %v2004
        %s2009 = sld [smem:[#allocation10 + $0x384]]
        %v2010 = vstv %s2009
        %v2011 = vmul.f32 %v1209, %v2010
        %v2012 = vmul.f32 %v1210, %v2010
        %v2013 = vmul.f32 %v1211, %v2010
        %v2014 = vmul.f32 %v1212, %v2010
        %v2015 = vadd.f32 %v2005, %v2011
        %v2016 = vadd.f32 %v2006, %v2012
        %v2017 = vadd.f32 %v2007, %v2013
        %v2018 = vadd.f32 %v2008, %v2014
        %s2019 = sld [smem:[#allocation10 + $0x385]]
        %v2020 = vstv %s2019
        %v2021 = vmul.f32 %v1213, %v2020
        %v2022 = vmul.f32 %v1214, %v2020
        %v2023 = vmul.f32 %v1215, %v2020
        %v2024 = vmul.f32 %v1216, %v2020
        %v2025 = vadd.f32 %v2015, %v2021
        %v2026 = vadd.f32 %v2016, %v2022
        %v2027 = vadd.f32 %v2017, %v2023
        %v2028 = vadd.f32 %v2018, %v2024
        %s2029 = sld [smem:[#allocation10 + $0x386]]
        %v2030 = vstv %s2029
        %v2031 = vmul.f32 %v1217, %v2030
        %v2032 = vmul.f32 %v1218, %v2030
        %v2033 = vmul.f32 %v1219, %v2030
        %v2034 = vmul.f32 %v1220, %v2030
        %v2035 = vadd.f32 %v2025, %v2031
        %v2036 = vadd.f32 %v2026, %v2032
        %v2037 = vadd.f32 %v2027, %v2033
        %v2038 = vadd.f32 %v2028, %v2034
        %s2039 = sld [smem:[#allocation10 + $0x387]]
        %v2040 = vstv %s2039
        %v2041 = vmul.f32 %v1221, %v2040
        %v2042 = vmul.f32 %v1222, %v2040
        %v2043 = vmul.f32 %v1223, %v2040
        %v2044 = vmul.f32 %v1224, %v2040
        %v2045 = vadd.f32 %v2035, %v2041
        %v2046 = vadd.f32 %v2036, %v2042
        %v2047 = vadd.f32 %v2037, %v2043
        %v2048 = vadd.f32 %v2038, %v2044
        %vm2049 = vcmp.gt.f32.partialorder %v2045, 0.0
        %vm2050 = vcmp.gt.f32.partialorder %v2046, 0.0
        %vm2051 = vcmp.gt.f32.partialorder %v2047, 0.0
        %vm2052 = vcmp.gt.f32.partialorder %v2048, 0.0
        %v2053 = vmul.f32 %v2045, 1.442695
        %v2054 = vpow.pop %v2053
        %v2055 = vmul.f32 %v2046, 1.442695
        %v2056 = vpow.pop %v2055
        %v2057 = vmul.f32 %v2047, 1.442695
        %v2058 = vpow.pop %v2057
        %v2059 = vmul.f32 %v2048, 1.442695
        %v2060 = vpow.pop %v2059
        %v2061 = vsub.f32 %v2054, 1.0
        %v2062 = vsub.f32 %v2056, 1.0
        %v2063 = vsub.f32 %v2058, 1.0
        %v2064 = vsub.f32 %v2060, 1.0
        %v2065 = vsel %vm2049, %v2045, %v2061
        %v2066 = vsel %vm2050, %v2046, %v2062
        %v2067 = vsel %vm2051, %v2047, %v2063
        %v2068 = vsel %vm2052, %v2048, %v2064
        %2069 = vst [vmem:[%s302 + $0xe0] sm:$0xff] %v2065
        %2070 = vst [vmem:[%s302 + $0xe8] sm:$0xff] %v2066
        %2071 = vst [vmem:[%s302 + $0xf0] sm:$0xff] %v2067
        %2072 = vst [vmem:[%s302 + $0xf8] sm:$0xff] %v2068
        %s2073 = sand.u32 %s143, 1
        %s2074 = scalar_lea.sflag [#allocation4], %s2073
        %s2075 = sand.u32 %s143, 1
        %s2076 = smul.addr %s2075, 256
        %s2077 = scalar_lea.vmem [#allocation12], %s2076
        // Predicated region
        $region61: #{tpu_custom_call.1} parent=39 // pred_check
          %p2078 = pneg %p153
        $region62: #{tpu_custom_call.1} parent=39 // pred_check_branch
          %2080 = sbr.rel (%p2078) target = $region64
        $region63: #{tpu_custom_call.1} parent=39 // pred_region
          %s2081 = smul.u32 32, %s25
          %2083 = vsyncadd %s2074, 0
          %s2084 = smul.addr %s2081, 8
          %s2085 = scalar_lea.hbm %s5, %s2084
          %s2086 = sshll.u32 %s2077, 4
          %s2087 = int_to_ptr.vmem [resolvable:$true] %s2086
          %s2088 = sshll.u32 %s2085, 4
          %s2089 = int_to_ptr.hbm [resolvable:$true] %s2088
          %2094 = dma.vmem_to_hbm [thread:$0]  %s2087, 4096, %s2089, %s2074, 128, 128, 8
        $region64: #{tpu_custom_call.1} parent=39 // pred_fallthru
          _
      $region40: #{tpu_custom_call.1} parent=5 // pred_fallthru
        _
      %p2095 = scmp.le.s32.totalorder 2, %s20
      // Predicated region
      $region65: #{tpu_custom_call.1} parent=5 // pred_check
        %p2096 = pneg %p2095
      $region66: #{tpu_custom_call.1} parent=5 // pred_check_branch
        %2098 = sbr.rel (%p2096) target = $region68
      $region67: #{tpu_custom_call.1} parent=5 // pred_region
        %s2099 = ssub.s32 %s20, 2
        // Predicated region
        $region69: #{tpu_custom_call.1} parent=67 // pred_check
          %p2100 = pneg %p159
        $region70: #{tpu_custom_call.1} parent=67 // pred_check_branch
          %2102 = sbr.rel (%p2100) target = $region72
        $region71: #{tpu_custom_call.1} parent=67 // pred_region
          %s2103 = sand.u32 %s144, 1
          %s2104 = scalar_lea.sflag [#allocation4], %s2103
          %s2105 = sand.u32 %s144, 1
          %s2106 = smul.addr %s2105, 256
          %s2107 = scalar_lea.vmem [#allocation12], %s2106
          %2109 = dma.done %s2104, 4096
        $region72: #{tpu_custom_call.1} parent=67 // pred_fallthru
          _
      $region68: #{tpu_custom_call.1} parent=5 // pred_fallthru
        _
    $region6: #{tpu_custom_call.1} parent=1 // loop_footer
      %s24 = sadd.s32 1, %s20
    $region7: #{tpu_custom_call.1} parent=1 // loop_footer_branch
      %19 = sbr.rel target = $region3
    $region8: #{tpu_custom_call.1} parent=1 // loop_exit
      _
    %2110 = vsyncpa [#allocation3], 1
    %s2111 = scalar_lea.sflag [#allocation3], 1
    %2112 = vsyncpa %s2111, 1
    %2113 = vsyncpa [#allocation8], 1
    %2114 = vsyncpa [#allocation4], 1
    %s2115 = scalar_lea.sflag [#allocation4], 1
    %2116 = vsyncpa %s2115, 1
    %2117 = vsyncpa [#allocation5], 1
    %s2118 = scalar_lea.sflag [#allocation5], 1
    %2119 = vsyncpa %s2118, 1
    %2120 = vsyncpa [#allocation6], 1
    %s2121 = scalar_lea.sflag [#allocation6], 1
    %2122 = vsyncpa %s2121, 1

</llo_original>
